<compile_context>
chip_gen: v7x
topology: tpu7x:2x2x1
jax: 0.10.0
libtpu: 0.0.40
codegen_flags: <defaults>
</compile_context>

<pallas_src>
import functools

import jax
import jax.numpy as jnp
from jax.experimental import pallas as pl
from jax.experimental.pallas import tpu as pltpu


def _yolo_kernel(p_ref, grid_ref, *out_refs, stride, na, no, n_extra, anchor_vec):
    """One (batch, HW-tile) grid step.

    p_ref    : VMEM (na, no, T)       raw head output, native dtype
    grid_ref : VMEM (2, T)            row 0 = grid_x, row 1 = grid_y (f32)
    out_refs : io_ref   VMEM (na, no, T)       decoded boxes / sigmoided scores
               pcls_ref VMEM (n_extra, no, T)  raw p[:,5:] * p[:,4:5] (only if n_extra > 0)
    """
    io_ref = out_refs[0]

    x = p_ref[...].astype(jnp.float32)          # in-register cast, (na, no, T)
    sig = jax.nn.sigmoid(x)                     # io = p.sigmoid()  (EUP slot)

    # Channels >= 4 keep the plain sigmoid: one full-block lane-dense store,
    # then overwrite the 4 decoded rows per anchor (row stores, full lanes).
    io_ref[...] = sig.astype(io_ref.dtype)

    gx = grid_ref[0:1, :]                       # (1, T)
    gy = grid_ref[1:2, :]                       # (1, T)
    for a in range(na):                         # na is tiny (3..9): static loop
        aw, ah = anchor_vec[a]                  # Python-constant scalars
        io_ref[a, 0:1, :] = ((sig[a, 0:1, :] * 2.0 - 0.5 + gx) * stride
                             ).astype(io_ref.dtype)
        io_ref[a, 1:2, :] = ((sig[a, 1:2, :] * 2.0 - 0.5 + gy) * stride
                             ).astype(io_ref.dtype)
        io_ref[a, 2:3, :] = ((sig[a, 2:3, :] * 2.0) ** 2 * (aw * stride)
                             ).astype(io_ref.dtype)
        io_ref[a, 3:4, :] = ((sig[a, 3:4, :] * 2.0) ** 2 * (ah * stride)
                             ).astype(io_ref.dtype)

    if n_extra > 0:
        pcls_ref = out_refs[1]
        obj = x[4]                              # raw anchor-4 block, (no, T)
        for j in range(n_extra):
            pcls_ref[j] = (x[j + 5] * obj).astype(pcls_ref.dtype)


class YOLOLayerPallas:
    """Inference-mode forward of YOLOLayer using one fused Pallas TPU kernel."""

    def __init__(self, anchors, nc, stride, out_dtype=jnp.float32):
        anchors = [float(a) for a in anchors]
        self.na = len(anchors) // 2
        self.nc = int(nc)
        self.no = self.nc + 5
        self.stride = float(stride)
        self.out_dtype = out_dtype
        # anchor_vec = anchors / stride, baked in as Python constants.
        self.anchor_vec = tuple(
            (anchors[2 * i] / self.stride, anchors[2 * i + 1] / self.stride)
            for i in range(self.na))

    @staticmethod
    def _vmem_budget_bytes():
        """(block budget, scoped vmem limit) sized from the chip's VMEM."""
        try:
            cap = pltpu.get_tpu_info().vmem_capacity_bytes
        except Exception:                       # pragma: no cover
            cap = 64 * 1024 * 1024              # v7x-safe fallback
        budget = max(4 * 1024 * 1024, cap // 4)        # leave big headroom
        limit = min(cap // 2, 64 * 1024 * 1024)
        return budget, limit

    @staticmethod
    def _choose_hw_tile(hw, per_lane_bytes, vmem_budget_bytes, bs, max_tile=8192):
        """Lane tile: full HW when tiny (always layout-legal), otherwise a
        multiple of 128 sized from the VMEM budget; ensures >= 2 grid steps
        along a 'parallel' axis so v7x's two TensorCores both get work."""
        if hw <= 128:
            return hw
        lanes = max(128, vmem_budget_bytes // max(per_lane_bytes, 1))
        tile = max(128, (min(hw, max_tile, lanes) // 128) * 128)
        if bs * pl.cdiv(hw, tile) < 2 and hw >= 256:
            tile = max(128, (pl.cdiv(hw, 2) // 128) * 128)
        return tile

    def __call__(self, p):
        bs, ch, ny, nx = p.shape
        na, no = self.na, self.no
        assert ch == na * no, "channel dim must be na * (nc + 5)"
        hw = ny * nx
        n_extra = max(na - 5, 0)

        # (B, NA*NO, H, W) -> (B, NA, NO, H*W): free reshape, native dtype kept.
        p4 = p.reshape(bs, na, no, hw)

        # grid (create_grids): gx[k] = k % nx, gy[k] = k // nx  (f32, exact).
        yv, xv = jnp.meshgrid(jnp.arange(ny, dtype=jnp.float32),
                              jnp.arange(nx, dtype=jnp.float32), indexing="ij")
        grid_xy = jnp.stack([xv.reshape(-1), yv.reshape(-1)], axis=0)   # (2, hw)

        in_bytes = jnp.dtype(p4.dtype).itemsize
        out_bytes = jnp.dtype(self.out_dtype).itemsize
        # Double-buffered pipelined blocks (input + grid + both outputs) plus
        # the live f32 temporaries the body creates (x, sig, slack).
        per_lane = 2 * (na * no * in_bytes + 2 * 4
                        + na * no * out_bytes + n_extra * no * out_bytes)
        per_lane += 3 * na * no * 4
        budget, vmem_limit = self._vmem_budget_bytes()
        hw_tile = self._choose_hw_tile(hw, per_lane, budget, bs)
        num_tiles = pl.cdiv(hw, hw_tile)

        kernel = functools.partial(_yolo_kernel, stride=self.stride,
                                   na=na, no=no, n_extra=n_extra,
                                   anchor_vec=self.anchor_vec)

        out_shapes = [jax.ShapeDtypeStruct((bs, na, no, hw), self.out_dtype)]
        out_specs = [pl.BlockSpec((None, na, no, hw_tile),
                                  lambda b, t: (b, 0, 0, t))]
        if n_extra > 0:
            out_shapes.append(
                jax.ShapeDtypeStruct((bs, n_extra, no, hw), self.out_dtype))
            out_specs.append(pl.BlockSpec((None, n_extra, no, hw_tile),
                                          lambda b, t: (b, 0, 0, t)))

        outs = pl.pallas_call(
            kernel,
            out_shape=tuple(out_shapes),
            grid=(bs, num_tiles),
            in_specs=[
                pl.BlockSpec((None, na, no, hw_tile), lambda b, t: (b, 0, 0, t)),
                pl.BlockSpec((2, hw_tile), lambda b, t: (0, t)),
            ],
            out_specs=tuple(out_specs),
            compiler_params=pltpu.CompilerParams(
                dimension_semantics=("parallel", "parallel"),
                vmem_limit_bytes=vmem_limit),
        )(p4, grid_xy)

        # Lane-dense kernel output -> the module's (bs, na*hw, no) layout.
        # One cheap XLA transpose (fuse into the io consumer when possible).
        io = outs[0].transpose(0, 1, 3, 2).reshape(bs, na * hw, no)

        if n_extra > 0:
            p_cls = outs[1].transpose(0, 1, 3, 2).reshape(bs, n_extra, ny, nx, no)
        else:
            # With na <= 5 the original expression yields an empty tensor.
            p_cls = jnp.zeros((bs, 0, ny, nx, no), self.out_dtype)
        return io, p_cls


def _reference_forward(p, anchors, nc, stride):
    """Pure-JAX transcription of the torch inference branch (for checking)."""
    anchors = jnp.asarray(anchors, jnp.float32).reshape(-1, 2)
    na = anchors.shape[0]
    no = nc + 5
    stride = float(stride)
    bs, _, ny, nx = p.shape
    anchor_wh = (anchors / stride).reshape(1, na, 1, 1, 2)

    yv, xv = jnp.meshgrid(jnp.arange(ny, dtype=jnp.float32),
                          jnp.arange(nx, dtype=jnp.float32), indexing="ij")
    grid = jnp.stack((xv, yv), 2).reshape(1, 1, ny, nx, 2)

    pp = p.reshape(bs, na, no, ny, nx).transpose(0, 1, 3, 4, 2)   # (bs,na,ny,nx,no)
    io = jax.nn.sigmoid(pp)
    io = io.at[..., :2].set(io[..., :2] * 2.0 - 0.5 + grid)
    io = io.at[..., 2:4].set((io[..., 2:4] * 2.0) ** 2 * anchor_wh)
    io = io.at[..., :4].set(io[..., :4] * stride)
    p_cls = pp[:, 5:] * pp[:, 4:5]                  # raw (pre-sigmoid), anchor-dim slice
    return io.reshape(bs, -1, no), p_cls


if __name__ == "__main__":
    # Deterministic config: 6 anchors (na > 5 so the p_cls branch is non-empty),
    # 3 classes, stride 16.
    anchors = [10, 13, 16, 30, 33, 23, 30, 61, 62, 45, 59, 119]
    nc = 3
    stride = 16
    na = len(anchors) // 2
    no = nc + 5

    bs, ny, nx = 2, 16, 16
    key = jax.random.PRNGKey(0)
    p = jax.random.normal(key, (bs, na * no, ny, nx), dtype=jnp.float32)

    layer = YOLOLayerPallas(anchors, nc, stride)
    io, p_cls = layer(p)
    io = jax.block_until_ready(io)
    p_cls = jax.block_until_ready(p_cls)

    io_ref, p_cls_ref = _reference_forward(p, anchors, nc, stride)
    assert io.shape == io_ref.shape and p_cls.shape == p_cls_ref.shape
    assert jnp.allclose(io, io_ref, atol=1e-4, rtol=1e-4)
    assert jnp.allclose(p_cls, p_cls_ref, atol=1e-4, rtol=1e-4)

    print("KERNEL_OK")
</pallas_src>

<mosaic_0001>
module attributes {stable_mosaic.version = 11 : i64} {
  func.func @_yolo_kernel(%arg0: i32, %arg1: i32, %arg2: memref<1x6x8x256xf32, #tpu.memory_space<vmem>>, %arg3: memref<2x256xf32, #tpu.memory_space<vmem>>, %arg4: memref<1x6x8x256xf32, #tpu.memory_space<vmem>>, %arg5: memref<1x1x8x256xf32, #tpu.memory_space<vmem>>) attributes {dimension_semantics = [#tpu.dimension_semantics<parallel>, #tpu.dimension_semantics<parallel>], iteration_bounds = array<i64: 2, 1>, scalar_prefetch = 0 : i64, scratch_operands = 0 : i64, tpu.core_type = #tpu.core_type<tc>, window_params = [{transform_indices = @transform_0, window_bounds = array<i64: 1, 6, 8, 256>}, {transform_indices = @transform_1, window_bounds = array<i64: 2, 256>}, {transform_indices = @transform_2, window_bounds = array<i64: 1, 6, 8, 256>}, {transform_indices = @transform_3, window_bounds = array<i64: 1, 1, 8, 256>}]} {
    %c0 = arith.constant 0 : index
    %c0_0 = arith.constant 0 : index
    %c0_1 = arith.constant 0 : index
    %c0_2 = arith.constant 0 : index
    %0 = vector.load %arg2[%c0, %c0_0, %c0_1, %c0_2] : memref<1x6x8x256xf32, #tpu.memory_space<vmem>>, vector<1x6x8x256xf32>
    %1 = vector.shape_cast %0 : vector<1x6x8x256xf32> to vector<6x8x256xf32>
    %2 = arith.negf %1 : vector<6x8x256xf32>
    %3 = math.exp %2 : vector<6x8x256xf32>
    %cst = arith.constant 1.000000e+00 : f32
    %4 = vector.broadcast %cst : f32 to vector<6x8x256xf32>
    %5 = arith.addf %4, %3 : vector<6x8x256xf32>
    %6 = arith.divf %4, %5 : vector<6x8x256xf32>
    %c0_3 = arith.constant 0 : index
    %c0_4 = arith.constant 0 : index
    %c0_5 = arith.constant 0 : index
    %c0_6 = arith.constant 0 : index
    %7 = vector.load %arg4[%c0_3, %c0_4, %c0_5, %c0_6] : memref<1x6x8x256xf32, #tpu.memory_space<vmem>>, vector<1x6x8x256xf32>
    %8 = vector.shape_cast %7 : vector<1x6x8x256xf32> to vector<6x8x256xf32>
    %9 = vector.shape_cast %6 : vector<6x8x256xf32> to vector<1x6x8x256xf32>
    tpu.vector_store %arg4[%c0_3, %c0_4, %c0_5, %c0_6], %9 {strides = array<i32>} : memref<1x6x8x256xf32, #tpu.memory_space<vmem>>, vector<1x6x8x256xf32>,
    %c0_7 = arith.constant 0 : index
    %c0_8 = arith.constant 0 : index
    %10 = vector.load %arg3[%c0_7, %c0_8] : memref<2x256xf32, #tpu.memory_space<vmem>>, vector<1x256xf32>
    %c1 = arith.constant 1 : index
    %c0_9 = arith.constant 0 : index
    %11 = vector.load %arg3[%c1, %c0_9] : memref<2x256xf32, #tpu.memory_space<vmem>>, vector<1x256xf32>
    %12 = vector.extract_strided_slice %6 {offsets = [0, 0, 0], sizes = [1, 1, 256], strides = [1, 1, 1]} : vector<6x8x256xf32> to vector<1x1x256xf32>
    %13 = vector.shape_cast %12 : vector<1x1x256xf32> to vector<1x256xf32>
    %cst_10 = arith.constant 2.000000e+00 : f32
    %14 = vector.broadcast %cst_10 : f32 to vector<1x256xf32>
    %15 = arith.mulf %13, %14 : vector<1x256xf32>
    %cst_11 = arith.constant 5.000000e-01 : f32
    %16 = vector.broadcast %cst_11 : f32 to vector<1x256xf32>
    %17 = arith.subf %15, %16 : vector<1x256xf32>
    %18 = arith.addf %17, %10 : vector<1x256xf32>
    %cst_12 = arith.constant 1.600000e+01 : f32
    %19 = vector.broadcast %cst_12 : f32 to vector<1x256xf32>
    %20 = arith.mulf %18, %19 : vector<1x256xf32>
    %c0_13 = arith.constant 0 : index
    %c0_14 = arith.constant 0 : index
    %c0_15 = arith.constant 0 : index
    %c0_16 = arith.constant 0 : index
    %21 = vector.load %arg4[%c0_13, %c0_14, %c0_15, %c0_16] : memref<1x6x8x256xf32, #tpu.memory_space<vmem>>, vector<1x1x1x256xf32>
    %22 = vector.shape_cast %21 : vector<1x1x1x256xf32> to vector<1x256xf32>
    %23 = vector.shape_cast %20 : vector<1x256xf32> to vector<1x1x1x256xf32>
    tpu.vector_store %arg4[%c0_13, %c0_14, %c0_15, %c0_16], %23 {strides = array<i32>} : memref<1x6x8x256xf32, #tpu.memory_space<vmem>>, vector<1x1x1x256xf32>,
    %24 = vector.extract_strided_slice %6 {offsets = [0, 1, 0], sizes = [1, 1, 256], strides = [1, 1, 1]} : vector<6x8x256xf32> to vector<1x1x256xf32>
    %25 = vector.shape_cast %24 : vector<1x1x256xf32> to vector<1x256xf32>
    %cst_17 = arith.constant 2.000000e+00 : f32
    %26 = vector.broadcast %cst_17 : f32 to vector<1x256xf32>
    %27 = arith.mulf %25, %26 : vector<1x256xf32>
    %cst_18 = arith.constant 5.000000e-01 : f32
    %28 = vector.broadcast %cst_18 : f32 to vector<1x256xf32>
    %29 = arith.subf %27, %28 : vector<1x256xf32>
    %30 = arith.addf %29, %11 : vector<1x256xf32>
    %cst_19 = arith.constant 1.600000e+01 : f32
    %31 = vector.broadcast %cst_19 : f32 to vector<1x256xf32>
    %32 = arith.mulf %30, %31 : vector<1x256xf32>
    %c0_20 = arith.constant 0 : index
    %c0_21 = arith.constant 0 : index
    %c1_22 = arith.constant 1 : index
    %c0_23 = arith.constant 0 : index
    %33 = vector.load %arg4[%c0_20, %c0_21, %c1_22, %c0_23] : memref<1x6x8x256xf32, #tpu.memory_space<vmem>>, vector<1x1x1x256xf32>
    %34 = vector.shape_cast %33 : vector<1x1x1x256xf32> to vector<1x256xf32>
    %35 = vector.shape_cast %32 : vector<1x256xf32> to vector<1x1x1x256xf32>
    tpu.vector_store %arg4[%c0_20, %c0_21, %c1_22, %c0_23], %35 {strides = array<i32>} : memref<1x6x8x256xf32, #tpu.memory_space<vmem>>, vector<1x1x1x256xf32>,
    %36 = vector.extract_strided_slice %6 {offsets = [0, 2, 0], sizes = [1, 1, 256], strides = [1, 1, 1]} : vector<6x8x256xf32> to vector<1x1x256xf32>
    %37 = vector.shape_cast %36 : vector<1x1x256xf32> to vector<1x256xf32>
    %cst_24 = arith.constant 2.000000e+00 : f32
    %38 = vector.broadcast %cst_24 : f32 to vector<1x256xf32>
    %39 = arith.mulf %37, %38 : vector<1x256xf32>
    %40 = arith.mulf %39, %39 : vector<1x256xf32>
    %cst_25 = arith.constant 1.000000e+01 : f32
    %41 = vector.broadcast %cst_25 : f32 to vector<1x256xf32>
    %42 = arith.mulf %40, %41 : vector<1x256xf32>
    %c0_26 = arith.constant 0 : index
    %c0_27 = arith.constant 0 : index
    %c2 = arith.constant 2 : index
    %c0_28 = arith.constant 0 : index
    %43 = vector.load %arg4[%c0_26, %c0_27, %c2, %c0_28] : memref<1x6x8x256xf32, #tpu.memory_space<vmem>>, vector<1x1x1x256xf32>
    %44 = vector.shape_cast %43 : vector<1x1x1x256xf32> to vector<1x256xf32>
    %45 = vector.shape_cast %42 : vector<1x256xf32> to vector<1x1x1x256xf32>
    tpu.vector_store %arg4[%c0_26, %c0_27, %c2, %c0_28], %45 {strides = array<i32>} : memref<1x6x8x256xf32, #tpu.memory_space<vmem>>, vector<1x1x1x256xf32>,
    %46 = vector.extract_strided_slice %6 {offsets = [0, 3, 0], sizes = [1, 1, 256], strides = [1, 1, 1]} : vector<6x8x256xf32> to vector<1x1x256xf32>
    %47 = vector.shape_cast %46 : vector<1x1x256xf32> to vector<1x256xf32>
    %cst_29 = arith.constant 2.000000e+00 : f32
    %48 = vector.broadcast %cst_29 : f32 to vector<1x256xf32>
    %49 = arith.mulf %47, %48 : vector<1x256xf32>
    %50 = arith.mulf %49, %49 : vector<1x256xf32>
    %cst_30 = arith.constant 1.300000e+01 : f32
    %51 = vector.broadcast %cst_30 : f32 to vector<1x256xf32>
    %52 = arith.mulf %50, %51 : vector<1x256xf32>
    %c0_31 = arith.constant 0 : index
    %c0_32 = arith.constant 0 : index
    %c3 = arith.constant 3 : index
    %c0_33 = arith.constant 0 : index
    %53 = vector.load %arg4[%c0_31, %c0_32, %c3, %c0_33] : memref<1x6x8x256xf32, #tpu.memory_space<vmem>>, vector<1x1x1x256xf32>
    %54 = vector.shape_cast %53 : vector<1x1x1x256xf32> to vector<1x256xf32>
    %55 = vector.shape_cast %52 : vector<1x256xf32> to vector<1x1x1x256xf32>
    tpu.vector_store %arg4[%c0_31, %c0_32, %c3, %c0_33], %55 {strides = array<i32>} : memref<1x6x8x256xf32, #tpu.memory_space<vmem>>, vector<1x1x1x256xf32>,
    %56 = vector.extract_strided_slice %6 {offsets = [1, 0, 0], sizes = [1, 1, 256], strides = [1, 1, 1]} : vector<6x8x256xf32> to vector<1x1x256xf32>
    %57 = vector.shape_cast %56 : vector<1x1x256xf32> to vector<1x256xf32>
    %cst_34 = arith.constant 2.000000e+00 : f32
    %58 = vector.broadcast %cst_34 : f32 to vector<1x256xf32>
    %59 = arith.mulf %57, %58 : vector<1x256xf32>
    %cst_35 = arith.constant 5.000000e-01 : f32
    %60 = vector.broadcast %cst_35 : f32 to vector<1x256xf32>
    %61 = arith.subf %59, %60 : vector<1x256xf32>
    %62 = arith.addf %61, %10 : vector<1x256xf32>
    %cst_36 = arith.constant 1.600000e+01 : f32
    %63 = vector.broadcast %cst_36 : f32 to vector<1x256xf32>
    %64 = arith.mulf %62, %63 : vector<1x256xf32>
    %c0_37 = arith.constant 0 : index
    %c1_38 = arith.constant 1 : index
    %c0_39 = arith.constant 0 : index
    %c0_40 = arith.constant 0 : index
    %65 = vector.load %arg4[%c0_37, %c1_38, %c0_39, %c0_40] : memref<1x6x8x256xf32, #tpu.memory_space<vmem>>, vector<1x1x1x256xf32>
    %66 = vector.shape_cast %65 : vector<1x1x1x256xf32> to vector<1x256xf32>
    %67 = vector.shape_cast %64 : vector<1x256xf32> to vector<1x1x1x256xf32>
    tpu.vector_store %arg4[%c0_37, %c1_38, %c0_39, %c0_40], %67 {strides = array<i32>} : memref<1x6x8x256xf32, #tpu.memory_space<vmem>>, vector<1x1x1x256xf32>,
    %68 = vector.extract_strided_slice %6 {offsets = [1, 1, 0], sizes = [1, 1, 256], strides = [1, 1, 1]} : vector<6x8x256xf32> to vector<1x1x256xf32>
    %69 = vector.shape_cast %68 : vector<1x1x256xf32> to vector<1x256xf32>
    %cst_41 = arith.constant 2.000000e+00 : f32
    %70 = vector.broadcast %cst_41 : f32 to vector<1x256xf32>
    %71 = arith.mulf %69, %70 : vector<1x256xf32>
    %cst_42 = arith.constant 5.000000e-01 : f32
    %72 = vector.broadcast %cst_42 : f32 to vector<1x256xf32>
    %73 = arith.subf %71, %72 : vector<1x256xf32>
    %74 = arith.addf %73, %11 : vector<1x256xf32>
    %cst_43 = arith.constant 1.600000e+01 : f32
    %75 = vector.broadcast %cst_43 : f32 to vector<1x256xf32>
    %76 = arith.mulf %74, %75 : vector<1x256xf32>
    %c0_44 = arith.constant 0 : index
    %c1_45 = arith.constant 1 : index
    %c1_46 = arith.constant 1 : index
    %c0_47 = arith.constant 0 : index
    %77 = vector.load %arg4[%c0_44, %c1_45, %c1_46, %c0_47] : memref<1x6x8x256xf32, #tpu.memory_space<vmem>>, vector<1x1x1x256xf32>
    %78 = vector.shape_cast %77 : vector<1x1x1x256xf32> to vector<1x256xf32>
    %79 = vector.shape_cast %76 : vector<1x256xf32> to vector<1x1x1x256xf32>
    tpu.vector_store %arg4[%c0_44, %c1_45, %c1_46, %c0_47], %79 {strides = array<i32>} : memref<1x6x8x256xf32, #tpu.memory_space<vmem>>, vector<1x1x1x256xf32>,
    %80 = vector.extract_strided_slice %6 {offsets = [1, 2, 0], sizes = [1, 1, 256], strides = [1, 1, 1]} : vector<6x8x256xf32> to vector<1x1x256xf32>
    %81 = vector.shape_cast %80 : vector<1x1x256xf32> to vector<1x256xf32>
    %cst_48 = arith.constant 2.000000e+00 : f32
    %82 = vector.broadcast %cst_48 : f32 to vector<1x256xf32>
    %83 = arith.mulf %81, %82 : vector<1x256xf32>
    %84 = arith.mulf %83, %83 : vector<1x256xf32>
    %cst_49 = arith.constant 1.600000e+01 : f32
    %85 = vector.broadcast %cst_49 : f32 to vector<1x256xf32>
    %86 = arith.mulf %84, %85 : vector<1x256xf32>
    %c0_50 = arith.constant 0 : index
    %c1_51 = arith.constant 1 : index
    %c2_52 = arith.constant 2 : index
    %c0_53 = arith.constant 0 : index
    %87 = vector.load %arg4[%c0_50, %c1_51, %c2_52, %c0_53] : memref<1x6x8x256xf32, #tpu.memory_space<vmem>>, vector<1x1x1x256xf32>
    %88 = vector.shape_cast %87 : vector<1x1x1x256xf32> to vector<1x256xf32>
    %89 = vector.shape_cast %86 : vector<1x256xf32> to vector<1x1x1x256xf32>
    tpu.vector_store %arg4[%c0_50, %c1_51, %c2_52, %c0_53], %89 {strides = array<i32>} : memref<1x6x8x256xf32, #tpu.memory_space<vmem>>, vector<1x1x1x256xf32>,
    %90 = vector.extract_strided_slice %6 {offsets = [1, 3, 0], sizes = [1, 1, 256], strides = [1, 1, 1]} : vector<6x8x256xf32> to vector<1x1x256xf32>
    %91 = vector.shape_cast %90 : vector<1x1x256xf32> to vector<1x256xf32>
    %cst_54 = arith.constant 2.000000e+00 : f32
    %92 = vector.broadcast %cst_54 : f32 to vector<1x256xf32>
    %93 = arith.mulf %91, %92 : vector<1x256xf32>
    %94 = arith.mulf %93, %93 : vector<1x256xf32>
    %cst_55 = arith.constant 3.000000e+01 : f32
    %95 = vector.broadcast %cst_55 : f32 to vector<1x256xf32>
    %96 = arith.mulf %94, %95 : vector<1x256xf32>
    %c0_56 = arith.constant 0 : index
    %c1_57 = arith.constant 1 : index
    %c3_58 = arith.constant 3 : index
    %c0_59 = arith.constant 0 : index
    %97 = vector.load %arg4[%c0_56, %c1_57, %c3_58, %c0_59] : memref<1x6x8x256xf32, #tpu.memory_space<vmem>>, vector<1x1x1x256xf32>
    %98 = vector.shape_cast %97 : vector<1x1x1x256xf32> to vector<1x256xf32>
    %99 = vector.shape_cast %96 : vector<1x256xf32> to vector<1x1x1x256xf32>
    tpu.vector_store %arg4[%c0_56, %c1_57, %c3_58, %c0_59], %99 {strides = array<i32>} : memref<1x6x8x256xf32, #tpu.memory_space<vmem>>, vector<1x1x1x256xf32>,
    %100 = vector.extract_strided_slice %6 {offsets = [2, 0, 0], sizes = [1, 1, 256], strides = [1, 1, 1]} : vector<6x8x256xf32> to vector<1x1x256xf32>
    %101 = vector.shape_cast %100 : vector<1x1x256xf32> to vector<1x256xf32>
    %cst_60 = arith.constant 2.000000e+00 : f32
    %102 = vector.broadcast %cst_60 : f32 to vector<1x256xf32>
    %103 = arith.mulf %101, %102 : vector<1x256xf32>
    %cst_61 = arith.constant 5.000000e-01 : f32
    %104 = vector.broadcast %cst_61 : f32 to vector<1x256xf32>
    %105 = arith.subf %103, %104 : vector<1x256xf32>
    %106 = arith.addf %105, %10 : vector<1x256xf32>
    %cst_62 = arith.constant 1.600000e+01 : f32
    %107 = vector.broadcast %cst_62 : f32 to vector<1x256xf32>
    %108 = arith.mulf %106, %107 : vector<1x256xf32>
    %c0_63 = arith.constant 0 : index
    %c2_64 = arith.constant 2 : index
    %c0_65 = arith.constant 0 : index
    %c0_66 = arith.constant 0 : index
    %109 = vector.load %arg4[%c0_63, %c2_64, %c0_65, %c0_66] : memref<1x6x8x256xf32, #tpu.memory_space<vmem>>, vector<1x1x1x256xf32>
    %110 = vector.shape_cast %109 : vector<1x1x1x256xf32> to vector<1x256xf32>
    %111 = vector.shape_cast %108 : vector<1x256xf32> to vector<1x1x1x256xf32>
    tpu.vector_store %arg4[%c0_63, %c2_64, %c0_65, %c0_66], %111 {strides = array<i32>} : memref<1x6x8x256xf32, #tpu.memory_space<vmem>>, vector<1x1x1x256xf32>,
    %112 = vector.extract_strided_slice %6 {offsets = [2, 1, 0], sizes = [1, 1, 256], strides = [1, 1, 1]} : vector<6x8x256xf32> to vector<1x1x256xf32>
    %113 = vector.shape_cast %112 : vector<1x1x256xf32> to vector<1x256xf32>
    %cst_67 = arith.constant 2.000000e+00 : f32
    %114 = vector.broadcast %cst_67 : f32 to vector<1x256xf32>
    %115 = arith.mulf %113, %114 : vector<1x256xf32>
    %cst_68 = arith.constant 5.000000e-01 : f32
    %116 = vector.broadcast %cst_68 : f32 to vector<1x256xf32>
    %117 = arith.subf %115, %116 : vector<1x256xf32>
    %118 = arith.addf %117, %11 : vector<1x256xf32>
    %cst_69 = arith.constant 1.600000e+01 : f32
    %119 = vector.broadcast %cst_69 : f32 to vector<1x256xf32>
    %120 = arith.mulf %118, %119 : vector<1x256xf32>
    %c0_70 = arith.constant 0 : index
    %c2_71 = arith.constant 2 : index
    %c1_72 = arith.constant 1 : index
    %c0_73 = arith.constant 0 : index
    %121 = vector.load %arg4[%c0_70, %c2_71, %c1_72, %c0_73] : memref<1x6x8x256xf32, #tpu.memory_space<vmem>>, vector<1x1x1x256xf32>
    %122 = vector.shape_cast %121 : vector<1x1x1x256xf32> to vector<1x256xf32>
    %123 = vector.shape_cast %120 : vector<1x256xf32> to vector<1x1x1x256xf32>
    tpu.vector_store %arg4[%c0_70, %c2_71, %c1_72, %c0_73], %123 {strides = array<i32>} : memref<1x6x8x256xf32, #tpu.memory_space<vmem>>, vector<1x1x1x256xf32>,
    %124 = vector.extract_strided_slice %6 {offsets = [2, 2, 0], sizes = [1, 1, 256], strides = [1, 1, 1]} : vector<6x8x256xf32> to vector<1x1x256xf32>
    %125 = vector.shape_cast %124 : vector<1x1x256xf32> to vector<1x256xf32>
    %cst_74 = arith.constant 2.000000e+00 : f32
    %126 = vector.broadcast %cst_74 : f32 to vector<1x256xf32>
    %127 = arith.mulf %125, %126 : vector<1x256xf32>
    %128 = arith.mulf %127, %127 : vector<1x256xf32>
    %cst_75 = arith.constant 3.300000e+01 : f32
    %129 = vector.broadcast %cst_75 : f32 to vector<1x256xf32>
    %130 = arith.mulf %128, %129 : vector<1x256xf32>
    %c0_76 = arith.constant 0 : index
    %c2_77 = arith.constant 2 : index
    %c2_78 = arith.constant 2 : index
    %c0_79 = arith.constant 0 : index
    %131 = vector.load %arg4[%c0_76, %c2_77, %c2_78, %c0_79] : memref<1x6x8x256xf32, #tpu.memory_space<vmem>>, vector<1x1x1x256xf32>
    %132 = vector.shape_cast %131 : vector<1x1x1x256xf32> to vector<1x256xf32>
    %133 = vector.shape_cast %130 : vector<1x256xf32> to vector<1x1x1x256xf32>
    tpu.vector_store %arg4[%c0_76, %c2_77, %c2_78, %c0_79], %133 {strides = array<i32>} : memref<1x6x8x256xf32, #tpu.memory_space<vmem>>, vector<1x1x1x256xf32>,
    %134 = vector.extract_strided_slice %6 {offsets = [2, 3, 0], sizes = [1, 1, 256], strides = [1, 1, 1]} : vector<6x8x256xf32> to vector<1x1x256xf32>
    %135 = vector.shape_cast %134 : vector<1x1x256xf32> to vector<1x256xf32>
    %cst_80 = arith.constant 2.000000e+00 : f32
    %136 = vector.broadcast %cst_80 : f32 to vector<1x256xf32>
    %137 = arith.mulf %135, %136 : vector<1x256xf32>
    %138 = arith.mulf %137, %137 : vector<1x256xf32>
    %cst_81 = arith.constant 2.300000e+01 : f32
    %139 = vector.broadcast %cst_81 : f32 to vector<1x256xf32>
    %140 = arith.mulf %138, %139 : vector<1x256xf32>
    %c0_82 = arith.constant 0 : index
    %c2_83 = arith.constant 2 : index
    %c3_84 = arith.constant 3 : index
    %c0_85 = arith.constant 0 : index
    %141 = vector.load %arg4[%c0_82, %c2_83, %c3_84, %c0_85] : memref<1x6x8x256xf32, #tpu.memory_space<vmem>>, vector<1x1x1x256xf32>
    %142 = vector.shape_cast %141 : vector<1x1x1x256xf32> to vector<1x256xf32>
    %143 = vector.shape_cast %140 : vector<1x256xf32> to vector<1x1x1x256xf32>
    tpu.vector_store %arg4[%c0_82, %c2_83, %c3_84, %c0_85], %143 {strides = array<i32>} : memref<1x6x8x256xf32, #tpu.memory_space<vmem>>, vector<1x1x1x256xf32>,
    %144 = vector.extract_strided_slice %6 {offsets = [3, 0, 0], sizes = [1, 1, 256], strides = [1, 1, 1]} : vector<6x8x256xf32> to vector<1x1x256xf32>
    %145 = vector.shape_cast %144 : vector<1x1x256xf32> to vector<1x256xf32>
    %cst_86 = arith.constant 2.000000e+00 : f32
    %146 = vector.broadcast %cst_86 : f32 to vector<1x256xf32>
    %147 = arith.mulf %145, %146 : vector<1x256xf32>
    %cst_87 = arith.constant 5.000000e-01 : f32
    %148 = vector.broadcast %cst_87 : f32 to vector<1x256xf32>
    %149 = arith.subf %147, %148 : vector<1x256xf32>
    %150 = arith.addf %149, %10 : vector<1x256xf32>
    %cst_88 = arith.constant 1.600000e+01 : f32
    %151 = vector.broadcast %cst_88 : f32 to vector<1x256xf32>
    %152 = arith.mulf %150, %151 : vector<1x256xf32>
    %c0_89 = arith.constant 0 : index
    %c3_90 = arith.constant 3 : index
    %c0_91 = arith.constant 0 : index
    %c0_92 = arith.constant 0 : index
    %153 = vector.load %arg4[%c0_89, %c3_90, %c0_91, %c0_92] : memref<1x6x8x256xf32, #tpu.memory_space<vmem>>, vector<1x1x1x256xf32>
    %154 = vector.shape_cast %153 : vector<1x1x1x256xf32> to vector<1x256xf32>
    %155 = vector.shape_cast %152 : vector<1x256xf32> to vector<1x1x1x256xf32>
    tpu.vector_store %arg4[%c0_89, %c3_90, %c0_91, %c0_92], %155 {strides = array<i32>} : memref<1x6x8x256xf32, #tpu.memory_space<vmem>>, vector<1x1x1x256xf32>,
    %156 = vector.extract_strided_slice %6 {offsets = [3, 1, 0], sizes = [1, 1, 256], strides = [1, 1, 1]} : vector<6x8x256xf32> to vector<1x1x256xf32>
    %157 = vector.shape_cast %156 : vector<1x1x256xf32> to vector<1x256xf32>
    %cst_93 = arith.constant 2.000000e+00 : f32
    %158 = vector.broadcast %cst_93 : f32 to vector<1x256xf32>
    %159 = arith.mulf %157, %158 : vector<1x256xf32>
    %cst_94 = arith.constant 5.000000e-01 : f32
    %160 = vector.broadcast %cst_94 : f32 to vector<1x256xf32>
    %161 = arith.subf %159, %160 : vector<1x256xf32>
    %162 = arith.addf %161, %11 : vector<1x256xf32>
    %cst_95 = arith.constant 1.600000e+01 : f32
    %163 = vector.broadcast %cst_95 : f32 to vector<1x256xf32>
    %164 = arith.mulf %162, %163 : vector<1x256xf32>
    %c0_96 = arith.constant 0 : index
    %c3_97 = arith.constant 3 : index
    %c1_98 = arith.constant 1 : index
    %c0_99 = arith.constant 0 : index
    %165 = vector.load %arg4[%c0_96, %c3_97, %c1_98, %c0_99] : memref<1x6x8x256xf32, #tpu.memory_space<vmem>>, vector<1x1x1x256xf32>
    %166 = vector.shape_cast %165 : vector<1x1x1x256xf32> to vector<1x256xf32>
    %167 = vector.shape_cast %164 : vector<1x256xf32> to vector<1x1x1x256xf32>
    tpu.vector_store %arg4[%c0_96, %c3_97, %c1_98, %c0_99], %167 {strides = array<i32>} : memref<1x6x8x256xf32, #tpu.memory_space<vmem>>, vector<1x1x1x256xf32>,
    %168 = vector.extract_strided_slice %6 {offsets = [3, 2, 0], sizes = [1, 1, 256], strides = [1, 1, 1]} : vector<6x8x256xf32> to vector<1x1x256xf32>
    %169 = vector.shape_cast %168 : vector<1x1x256xf32> to vector<1x256xf32>
    %cst_100 = arith.constant 2.000000e+00 : f32
    %170 = vector.broadcast %cst_100 : f32 to vector<1x256xf32>
    %171 = arith.mulf %169, %170 : vector<1x256xf32>
    %172 = arith.mulf %171, %171 : vector<1x256xf32>
    %cst_101 = arith.constant 3.000000e+01 : f32
    %173 = vector.broadcast %cst_101 : f32 to vector<1x256xf32>
    %174 = arith.mulf %172, %173 : vector<1x256xf32>
    %c0_102 = arith.constant 0 : index
    %c3_103 = arith.constant 3 : index
    %c2_104 = arith.constant 2 : index
    %c0_105 = arith.constant 0 : index
    %175 = vector.load %arg4[%c0_102, %c3_103, %c2_104, %c0_105] : memref<1x6x8x256xf32, #tpu.memory_space<vmem>>, vector<1x1x1x256xf32>
    %176 = vector.shape_cast %175 : vector<1x1x1x256xf32> to vector<1x256xf32>
    %177 = vector.shape_cast %174 : vector<1x256xf32> to vector<1x1x1x256xf32>
    tpu.vector_store %arg4[%c0_102, %c3_103, %c2_104, %c0_105], %177 {strides = array<i32>} : memref<1x6x8x256xf32, #tpu.memory_space<vmem>>, vector<1x1x1x256xf32>,
    %178 = vector.extract_strided_slice %6 {offsets = [3, 3, 0], sizes = [1, 1, 256], strides = [1, 1, 1]} : vector<6x8x256xf32> to vector<1x1x256xf32>
    %179 = vector.shape_cast %178 : vector<1x1x256xf32> to vector<1x256xf32>
    %cst_106 = arith.constant 2.000000e+00 : f32
    %180 = vector.broadcast %cst_106 : f32 to vector<1x256xf32>
    %181 = arith.mulf %179, %180 : vector<1x256xf32>
    %182 = arith.mulf %181, %181 : vector<1x256xf32>
    %cst_107 = arith.constant 6.100000e+01 : f32
    %183 = vector.broadcast %cst_107 : f32 to vector<1x256xf32>
    %184 = arith.mulf %182, %183 : vector<1x256xf32>
    %c0_108 = arith.constant 0 : index
    %c3_109 = arith.constant 3 : index
    %c3_110 = arith.constant 3 : index
    %c0_111 = arith.constant 0 : index
    %185 = vector.load %arg4[%c0_108, %c3_109, %c3_110, %c0_111] : memref<1x6x8x256xf32, #tpu.memory_space<vmem>>, vector<1x1x1x256xf32>
    %186 = vector.shape_cast %185 : vector<1x1x1x256xf32> to vector<1x256xf32>
    %187 = vector.shape_cast %184 : vector<1x256xf32> to vector<1x1x1x256xf32>
    tpu.vector_store %arg4[%c0_108, %c3_109, %c3_110, %c0_111], %187 {strides = array<i32>} : memref<1x6x8x256xf32, #tpu.memory_space<vmem>>, vector<1x1x1x256xf32>,
    %188 = vector.extract_strided_slice %6 {offsets = [4, 0, 0], sizes = [1, 1, 256], strides = [1, 1, 1]} : vector<6x8x256xf32> to vector<1x1x256xf32>
    %189 = vector.shape_cast %188 : vector<1x1x256xf32> to vector<1x256xf32>
    %cst_112 = arith.constant 2.000000e+00 : f32
    %190 = vector.broadcast %cst_112 : f32 to vector<1x256xf32>
    %191 = arith.mulf %189, %190 : vector<1x256xf32>
    %cst_113 = arith.constant 5.000000e-01 : f32
    %192 = vector.broadcast %cst_113 : f32 to vector<1x256xf32>
    %193 = arith.subf %191, %192 : vector<1x256xf32>
    %194 = arith.addf %193, %10 : vector<1x256xf32>
    %cst_114 = arith.constant 1.600000e+01 : f32
    %195 = vector.broadcast %cst_114 : f32 to vector<1x256xf32>
    %196 = arith.mulf %194, %195 : vector<1x256xf32>
    %c0_115 = arith.constant 0 : index
    %c4 = arith.constant 4 : index
    %c0_116 = arith.constant 0 : index
    %c0_117 = arith.constant 0 : index
    %197 = vector.load %arg4[%c0_115, %c4, %c0_116, %c0_117] : memref<1x6x8x256xf32, #tpu.memory_space<vmem>>, vector<1x1x1x256xf32>
    %198 = vector.shape_cast %197 : vector<1x1x1x256xf32> to vector<1x256xf32>
    %199 = vector.shape_cast %196 : vector<1x256xf32> to vector<1x1x1x256xf32>
    tpu.vector_store %arg4[%c0_115, %c4, %c0_116, %c0_117], %199 {strides = array<i32>} : memref<1x6x8x256xf32, #tpu.memory_space<vmem>>, vector<1x1x1x256xf32>,
    %200 = vector.extract_strided_slice %6 {offsets = [4, 1, 0], sizes = [1, 1, 256], strides = [1, 1, 1]} : vector<6x8x256xf32> to vector<1x1x256xf32>
    %201 = vector.shape_cast %200 : vector<1x1x256xf32> to vector<1x256xf32>
    %cst_118 = arith.constant 2.000000e+00 : f32
    %202 = vector.broadcast %cst_118 : f32 to vector<1x256xf32>
    %203 = arith.mulf %201, %202 : vector<1x256xf32>
    %cst_119 = arith.constant 5.000000e-01 : f32
    %204 = vector.broadcast %cst_119 : f32 to vector<1x256xf32>
    %205 = arith.subf %203, %204 : vector<1x256xf32>
    %206 = arith.addf %205, %11 : vector<1x256xf32>
    %cst_120 = arith.constant 1.600000e+01 : f32
    %207 = vector.broadcast %cst_120 : f32 to vector<1x256xf32>
    %208 = arith.mulf %206, %207 : vector<1x256xf32>
    %c0_121 = arith.constant 0 : index
    %c4_122 = arith.constant 4 : index
    %c1_123 = arith.constant 1 : index
    %c0_124 = arith.constant 0 : index
    %209 = vector.load %arg4[%c0_121, %c4_122, %c1_123, %c0_124] : memref<1x6x8x256xf32, #tpu.memory_space<vmem>>, vector<1x1x1x256xf32>
    %210 = vector.shape_cast %209 : vector<1x1x1x256xf32> to vector<1x256xf32>
    %211 = vector.shape_cast %208 : vector<1x256xf32> to vector<1x1x1x256xf32>
    tpu.vector_store %arg4[%c0_121, %c4_122, %c1_123, %c0_124], %211 {strides = array<i32>} : memref<1x6x8x256xf32, #tpu.memory_space<vmem>>, vector<1x1x1x256xf32>,
    %212 = vector.extract_strided_slice %6 {offsets = [4, 2, 0], sizes = [1, 1, 256], strides = [1, 1, 1]} : vector<6x8x256xf32> to vector<1x1x256xf32>
    %213 = vector.shape_cast %212 : vector<1x1x256xf32> to vector<1x256xf32>
    %cst_125 = arith.constant 2.000000e+00 : f32
    %214 = vector.broadcast %cst_125 : f32 to vector<1x256xf32>
    %215 = arith.mulf %213, %214 : vector<1x256xf32>
    %216 = arith.mulf %215, %215 : vector<1x256xf32>
    %cst_126 = arith.constant 6.200000e+01 : f32
    %217 = vector.broadcast %cst_126 : f32 to vector<1x256xf32>
    %218 = arith.mulf %216, %217 : vector<1x256xf32>
    %c0_127 = arith.constant 0 : index
    %c4_128 = arith.constant 4 : index
    %c2_129 = arith.constant 2 : index
    %c0_130 = arith.constant 0 : index
    %219 = vector.load %arg4[%c0_127, %c4_128, %c2_129, %c0_130] : memref<1x6x8x256xf32, #tpu.memory_space<vmem>>, vector<1x1x1x256xf32>
    %220 = vector.shape_cast %219 : vector<1x1x1x256xf32> to vector<1x256xf32>
    %221 = vector.shape_cast %218 : vector<1x256xf32> to vector<1x1x1x256xf32>
    tpu.vector_store %arg4[%c0_127, %c4_128, %c2_129, %c0_130], %221 {strides = array<i32>} : memref<1x6x8x256xf32, #tpu.memory_space<vmem>>, vector<1x1x1x256xf32>,
    %222 = vector.extract_strided_slice %6 {offsets = [4, 3, 0], sizes = [1, 1, 256], strides = [1, 1, 1]} : vector<6x8x256xf32> to vector<1x1x256xf32>
    %223 = vector.shape_cast %222 : vector<1x1x256xf32> to vector<1x256xf32>
    %cst_131 = arith.constant 2.000000e+00 : f32
    %224 = vector.broadcast %cst_131 : f32 to vector<1x256xf32>
    %225 = arith.mulf %223, %224 : vector<1x256xf32>
    %226 = arith.mulf %225, %225 : vector<1x256xf32>
    %cst_132 = arith.constant 4.500000e+01 : f32
    %227 = vector.broadcast %cst_132 : f32 to vector<1x256xf32>
    %228 = arith.mulf %226, %227 : vector<1x256xf32>
    %c0_133 = arith.constant 0 : index
    %c4_134 = arith.constant 4 : index
    %c3_135 = arith.constant 3 : index
    %c0_136 = arith.constant 0 : index
    %229 = vector.load %arg4[%c0_133, %c4_134, %c3_135, %c0_136] : memref<1x6x8x256xf32, #tpu.memory_space<vmem>>, vector<1x1x1x256xf32>
    %230 = vector.shape_cast %229 : vector<1x1x1x256xf32> to vector<1x256xf32>
    %231 = vector.shape_cast %228 : vector<1x256xf32> to vector<1x1x1x256xf32>
    tpu.vector_store %arg4[%c0_133, %c4_134, %c3_135, %c0_136], %231 {strides = array<i32>} : memref<1x6x8x256xf32, #tpu.memory_space<vmem>>, vector<1x1x1x256xf32>,
    %232 = vector.extract_strided_slice %6 {offsets = [5, 0, 0], sizes = [1, 1, 256], strides = [1, 1, 1]} : vector<6x8x256xf32> to vector<1x1x256xf32>
    %233 = vector.shape_cast %232 : vector<1x1x256xf32> to vector<1x256xf32>
    %cst_137 = arith.constant 2.000000e+00 : f32
    %234 = vector.broadcast %cst_137 : f32 to vector<1x256xf32>
    %235 = arith.mulf %233, %234 : vector<1x256xf32>
    %cst_138 = arith.constant 5.000000e-01 : f32
    %236 = vector.broadcast %cst_138 : f32 to vector<1x256xf32>
    %237 = arith.subf %235, %236 : vector<1x256xf32>
    %238 = arith.addf %237, %10 : vector<1x256xf32>
    %cst_139 = arith.constant 1.600000e+01 : f32
    %239 = vector.broadcast %cst_139 : f32 to vector<1x256xf32>
    %240 = arith.mulf %238, %239 : vector<1x256xf32>
    %c0_140 = arith.constant 0 : index
    %c5 = arith.constant 5 : index
    %c0_141 = arith.constant 0 : index
    %c0_142 = arith.constant 0 : index
    %241 = vector.load %arg4[%c0_140, %c5, %c0_141, %c0_142] : memref<1x6x8x256xf32, #tpu.memory_space<vmem>>, vector<1x1x1x256xf32>
    %242 = vector.shape_cast %241 : vector<1x1x1x256xf32> to vector<1x256xf32>
    %243 = vector.shape_cast %240 : vector<1x256xf32> to vector<1x1x1x256xf32>
    tpu.vector_store %arg4[%c0_140, %c5, %c0_141, %c0_142], %243 {strides = array<i32>} : memref<1x6x8x256xf32, #tpu.memory_space<vmem>>, vector<1x1x1x256xf32>,
    %244 = vector.extract_strided_slice %6 {offsets = [5, 1, 0], sizes = [1, 1, 256], strides = [1, 1, 1]} : vector<6x8x256xf32> to vector<1x1x256xf32>
    %245 = vector.shape_cast %244 : vector<1x1x256xf32> to vector<1x256xf32>
    %cst_143 = arith.constant 2.000000e+00 : f32
    %246 = vector.broadcast %cst_143 : f32 to vector<1x256xf32>
    %247 = arith.mulf %245, %246 : vector<1x256xf32>
    %cst_144 = arith.constant 5.000000e-01 : f32
    %248 = vector.broadcast %cst_144 : f32 to vector<1x256xf32>
    %249 = arith.subf %247, %248 : vector<1x256xf32>
    %250 = arith.addf %249, %11 : vector<1x256xf32>
    %cst_145 = arith.constant 1.600000e+01 : f32
    %251 = vector.broadcast %cst_145 : f32 to vector<1x256xf32>
    %252 = arith.mulf %250, %251 : vector<1x256xf32>
    %c0_146 = arith.constant 0 : index
    %c5_147 = arith.constant 5 : index
    %c1_148 = arith.constant 1 : index
    %c0_149 = arith.constant 0 : index
    %253 = vector.load %arg4[%c0_146, %c5_147, %c1_148, %c0_149] : memref<1x6x8x256xf32, #tpu.memory_space<vmem>>, vector<1x1x1x256xf32>
    %254 = vector.shape_cast %253 : vector<1x1x1x256xf32> to vector<1x256xf32>
    %255 = vector.shape_cast %252 : vector<1x256xf32> to vector<1x1x1x256xf32>
    tpu.vector_store %arg4[%c0_146, %c5_147, %c1_148, %c0_149], %255 {strides = array<i32>} : memref<1x6x8x256xf32, #tpu.memory_space<vmem>>, vector<1x1x1x256xf32>,
    %256 = vector.extract_strided_slice %6 {offsets = [5, 2, 0], sizes = [1, 1, 256], strides = [1, 1, 1]} : vector<6x8x256xf32> to vector<1x1x256xf32>
    %257 = vector.shape_cast %256 : vector<1x1x256xf32> to vector<1x256xf32>
    %cst_150 = arith.constant 2.000000e+00 : f32
    %258 = vector.broadcast %cst_150 : f32 to vector<1x256xf32>
    %259 = arith.mulf %257, %258 : vector<1x256xf32>
    %260 = arith.mulf %259, %259 : vector<1x256xf32>
    %cst_151 = arith.constant 5.900000e+01 : f32
    %261 = vector.broadcast %cst_151 : f32 to vector<1x256xf32>
    %262 = arith.mulf %260, %261 : vector<1x256xf32>
    %c0_152 = arith.constant 0 : index
    %c5_153 = arith.constant 5 : index
    %c2_154 = arith.constant 2 : index
    %c0_155 = arith.constant 0 : index
    %263 = vector.load %arg4[%c0_152, %c5_153, %c2_154, %c0_155] : memref<1x6x8x256xf32, #tpu.memory_space<vmem>>, vector<1x1x1x256xf32>
    %264 = vector.shape_cast %263 : vector<1x1x1x256xf32> to vector<1x256xf32>
    %265 = vector.shape_cast %262 : vector<1x256xf32> to vector<1x1x1x256xf32>
    tpu.vector_store %arg4[%c0_152, %c5_153, %c2_154, %c0_155], %265 {strides = array<i32>} : memref<1x6x8x256xf32, #tpu.memory_space<vmem>>, vector<1x1x1x256xf32>,
    %266 = vector.extract_strided_slice %6 {offsets = [5, 3, 0], sizes = [1, 1, 256], strides = [1, 1, 1]} : vector<6x8x256xf32> to vector<1x1x256xf32>
    %267 = vector.shape_cast %266 : vector<1x1x256xf32> to vector<1x256xf32>
    %cst_156 = arith.constant 2.000000e+00 : f32
    %268 = vector.broadcast %cst_156 : f32 to vector<1x256xf32>
    %269 = arith.mulf %267, %268 : vector<1x256xf32>
    %270 = arith.mulf %269, %269 : vector<1x256xf32>
    %cst_157 = arith.constant 1.190000e+02 : f32
    %271 = vector.broadcast %cst_157 : f32 to vector<1x256xf32>
    %272 = arith.mulf %270, %271 : vector<1x256xf32>
    %c0_158 = arith.constant 0 : index
    %c5_159 = arith.constant 5 : index
    %c3_160 = arith.constant 3 : index
    %c0_161 = arith.constant 0 : index
    %273 = vector.load %arg4[%c0_158, %c5_159, %c3_160, %c0_161] : memref<1x6x8x256xf32, #tpu.memory_space<vmem>>, vector<1x1x1x256xf32>
    %274 = vector.shape_cast %273 : vector<1x1x1x256xf32> to vector<1x256xf32>
    %275 = vector.shape_cast %272 : vector<1x256xf32> to vector<1x1x1x256xf32>
    tpu.vector_store %arg4[%c0_158, %c5_159, %c3_160, %c0_161], %275 {strides = array<i32>} : memref<1x6x8x256xf32, #tpu.memory_space<vmem>>, vector<1x1x1x256xf32>,
    %276 = vector.extract_strided_slice %1 {offsets = [4, 0, 0], sizes = [1, 8, 256], strides = [1, 1, 1]} : vector<6x8x256xf32> to vector<1x8x256xf32>
    %277 = vector.shape_cast %276 : vector<1x8x256xf32> to vector<8x256xf32>
    %278 = vector.extract_strided_slice %1 {offsets = [5, 0, 0], sizes = [1, 8, 256], strides = [1, 1, 1]} : vector<6x8x256xf32> to vector<1x8x256xf32>
    %279 = vector.shape_cast %278 : vector<1x8x256xf32> to vector<8x256xf32>
    %280 = arith.mulf %279, %277 : vector<8x256xf32>
    %c0_162 = arith.constant 0 : index
    %c0_163 = arith.constant 0 : index
    %c0_164 = arith.constant 0 : index
    %c0_165 = arith.constant 0 : index
    %281 = vector.load %arg5[%c0_162, %c0_163, %c0_164, %c0_165] : memref<1x1x8x256xf32, #tpu.memory_space<vmem>>, vector<1x1x8x256xf32>
    %282 = vector.shape_cast %281 : vector<1x1x8x256xf32> to vector<8x256xf32>
    %283 = vector.shape_cast %280 : vector<8x256xf32> to vector<1x1x8x256xf32>
    tpu.vector_store %arg5[%c0_162, %c0_163, %c0_164, %c0_165], %283 {strides = array<i32>} : memref<1x1x8x256xf32, #tpu.memory_space<vmem>>, vector<1x1x8x256xf32>,
    return
  }
  func.func @transform_0(%arg0: i32, %arg1: i32) -> (i32, i32, i32, i32) {
    %c0_i32 = arith.constant 0 : i32
    %c0_i32_0 = arith.constant 0 : i32
    %c0_i32_1 = arith.constant 0 : i32
    return %arg0, %c0_i32, %c0_i32_0, %arg1 : i32, i32, i32, i32
  }
  func.func @transform_1(%arg0: i32, %arg1: i32) -> (i32, i32) {
    %c0_i32 = arith.constant 0 : i32
    %c0_i32_0 = arith.constant 0 : i32
    return %c0_i32, %arg1 : i32, i32
  }
  func.func @transform_2(%arg0: i32, %arg1: i32) -> (i32, i32, i32, i32) {
    %c0_i32 = arith.constant 0 : i32
    %c0_i32_0 = arith.constant 0 : i32
    %c0_i32_1 = arith.constant 0 : i32
    return %arg0, %c0_i32, %c0_i32_0, %arg1 : i32, i32, i32, i32
  }
  func.func @transform_3(%arg0: i32, %arg1: i32) -> (i32, i32, i32, i32) {
    %c0_i32 = arith.constant 0 : i32
    %c0_i32_0 = arith.constant 0 : i32
    %c0_i32_1 = arith.constant 0 : i32
    return %arg0, %c0_i32, %c0_i32_0, %arg1 : i32, i32, i32, i32
  }
}

</mosaic_0001>

<llo_original>
// kernel: tpu_custom_call.1
$region0: #{tpu_custom_call.1}
  #allocation0 [shape = 'u32[]', space=smem, size = 0x4, offset = 0x4, fixed_abs, tag = 'smem constant byte address 0x4 - core index']
  #allocation1 [shape = 'u32[144,128]{1,0:T(1,128)}', space=vmem, size = 0x12000, scoped, tag = 'internal scratch']
  %s0 = inlined_call_operand.hbm [shape: f32[2,6,8,256], index: 0, kind: input, shape index: {}]
  %s1 = inlined_call_operand.hbm [shape: f32[2,256], index: 1, kind: input, shape index: {}]
  %s2 = inlined_call_operand.hbm [shape: f32[2,6,8,256], index: 2, kind: output, shape index: {0}]
  %s3 = inlined_call_operand.hbm [shape: f32[2,1,8,256], index: 3, kind: output, shape index: {1}]
  %4 = xla_tuple %s2, %s3
  %s5 = sld [smem:[#allocation0]]
  $region57: #{tpu_custom_call.1} parent=0
    _
  %s7 = ssub.s32 1, %s5
  %s8 = scalar_select 0, %s7, %s5
  $region1: #{tpu_custom_call.1} parent=0
    #allocation2 [shape = 'u8[98304]{0}', space=vmem, size = 0x18000, scoped, tag = 'input window, operand 0']
    #allocation3 [shape = 's32[2]{0}', space=sflag, size = 0x8, scoped, tag = 'scoped memory for tpu_custom_call.1']
    #allocation4 [shape = 's32[2]{0}', space=sflag, size = 0x8, scoped, tag = 'scoped memory for tpu_custom_call.1']
    #allocation5 [shape = 'u8[2048]{0}', space=vmem, size = 0x800, scoped, tag = 'input window, operand 1, single buffered']
    #allocation6 [shape = 's32[1]{0}', space=sflag, size = 0x4, scoped, tag = 'scoped memory for tpu_custom_call.1']
    #allocation7 [shape = 'u8[98304]{0}', space=vmem, size = 0x18000, scoped, tag = 'output window, operand 0']
    #allocation8 [shape = 'u8[16384]{0}', space=vmem, size = 0x4000, scoped, tag = 'output window, operand 1']
    #allocation9 [shape = 's32[2]{0}', space=sflag, size = 0x8, scoped, tag = 'scoped memory for tpu_custom_call.1']
    %9 = vsyncpa [#allocation3], 0
    %s10 = scalar_lea.sflag [#allocation3], 1
    %11 = vsyncpa %s10, 0
    %12 = vsyncpa [#allocation6], 0
    %13 = vsyncpa [#allocation4], 0
    %s14 = scalar_lea.sflag [#allocation4], 1
    %15 = vsyncpa %s14, 0
    %16 = vsyncpa [#allocation9], 0
    %s17 = scalar_lea.sflag [#allocation9], 1
    %18 = vsyncpa %s17, 0
    loop: start=0, step=1, limit=4
    $region2: #{tpu_custom_call.1} parent=1 // loop_pre_header
      _
    $region3: #{tpu_custom_call.1} parent=1 // loop_header
      %s20 = sphi 0, %s24
      %p21 = scmp.ge.s32.totalorder %s20, 4
      %s27 = sphi 0, %s39
      %s28 = sphi 0, %s35
      %s29 = sphi 0, %s27
      %s30 = sphi 0, %s28
      %s31 = sphi 0, %s29
      %s32 = sphi 0, %s30
      %s44 = sphi 0, %s46
      %s47 = sphi 0, %s44
      %s48 = sphi 0, %s47
      %s64 = sphi 0, %s48
      %s70 = sphi 0, %s72
      %s73 = sphi 0, %s70
      %s74 = sphi 0, %s73
      %s90 = sphi 0, %s74
      %s98 = sphi 0, %s100
      %s101 = sphi 0, %s98
      %s102 = sphi 0, %s101
      %s118 = sphi 0, %s102
      %s126 = sphi 0, %s128
      %s129 = sphi 0, %s126
      %s130 = sphi 0, %s129
      %s146 = sphi 0, %s130
    $region4: #{tpu_custom_call.1} parent=1 // loop_header_branch
      %23 = sbr.rel (%p21) target = $region8
    $region5: #{tpu_custom_call.1} parent=1 // loop_body
      %s25 = ssub.s32 %s20, 1
      %s26 = ssub.s32 %s20, 2
      %s33 = sadd.s32 1, %s28
      %p34 = scmp.ge.s32.totalorder %s33, 1
      %s35 = scalar_select %p34, 0, %s33
      %s36 = sadd.s32 1, %s27
      %s37 = scalar_select %p34, %s36, %s27
      %p38 = scmp.ge.s32.totalorder %s37, 2
      %s39 = scalar_select %p38, 0, %s37
      %s40 = ssub.s32 %s27, %s39
      %s41 = ssub.s32 %s28, %s35
      %s42 = sor.u32 %s40, %s41
      %p43 = scmp.eq.s32.totalorder %s42, 0
      %s45 = sadd.s32 %s44, 1
      %s46 = scalar_select %p43, %s44, %s45
      %p49 = pneg %p43
      %p50 = scmp.eq.s32.totalorder %s20, 1
      %p51 = por %p49, %p50
      %p52 = scmp.ne.s32.totalorder %s44, %s47
      %p53 = scmp.eq.s32.totalorder %s20, 0
      %p54 = por %p52, %p53
      %p55 = scmp.ne.s32.totalorder %s44, %s47
      %p56 = scmp.eq.s32.totalorder %s25, 1
      %p57 = por %p55, %p56
      %p58 = scmp.ne.s32.totalorder %s47, %s48
      %p59 = scmp.eq.s32.totalorder %s25, 0
      %p60 = por %p58, %p59
      %p61 = scmp.ne.s32.totalorder %s47, %s48
      %p62 = scmp.eq.s32.totalorder %s26, 1
      %p63 = por %p61, %p62
      %p65 = scmp.ne.s32.totalorder %s48, %s64
      %p66 = scmp.eq.s32.totalorder %s26, 0
      %p67 = por %p65, %p66
      %s68 = ssub.s32 %s28, %s35
      %p69 = scmp.eq.s32.totalorder %s68, 0
      %s71 = sadd.s32 %s70, 1
      %s72 = scalar_select %p69, %s70, %s71
      %p75 = pneg %p69
      %p76 = scmp.eq.s32.totalorder %s20, 1
      %p77 = por %p75, %p76
      %p78 = scmp.ne.s32.totalorder %s70, %s73
      %p79 = scmp.eq.s32.totalorder %s20, 0
      %p80 = por %p78, %p79
      %p81 = scmp.ne.s32.totalorder %s70, %s73
      %p82 = scmp.eq.s32.totalorder %s25, 1
      %p83 = por %p81, %p82
      %p84 = scmp.ne.s32.totalorder %s73, %s74
      %p85 = scmp.eq.s32.totalorder %s25, 0
      %p86 = por %p84, %p85
      %p87 = scmp.ne.s32.totalorder %s73, %s74
      %p88 = scmp.eq.s32.totalorder %s26, 1
      %p89 = por %p87, %p88
      %p91 = scmp.ne.s32.totalorder %s74, %s90
      %p92 = scmp.eq.s32.totalorder %s26, 0
      %p93 = por %p91, %p92
      %s94 = ssub.s32 %s27, %s39
      %s95 = ssub.s32 %s28, %s35
      %s96 = sor.u32 %s94, %s95
      %p97 = scmp.eq.s32.totalorder %s96, 0
      %s99 = sadd.s32 %s98, 1
      %s100 = scalar_select %p97, %s98, %s99
      %p103 = pneg %p97
      %p104 = scmp.eq.s32.totalorder %s20, 1
      %p105 = por %p103, %p104
      %p106 = scmp.ne.s32.totalorder %s98, %s101
      %p107 = scmp.eq.s32.totalorder %s20, 0
      %p108 = por %p106, %p107
      %p109 = scmp.ne.s32.totalorder %s98, %s101
      %p110 = scmp.eq.s32.totalorder %s25, 1
      %p111 = por %p109, %p110
      %p112 = scmp.ne.s32.totalorder %s101, %s102
      %p113 = scmp.eq.s32.totalorder %s25, 0
      %p114 = por %p112, %p113
      %p115 = scmp.ne.s32.totalorder %s101, %s102
      %p116 = scmp.eq.s32.totalorder %s26, 1
      %p117 = por %p115, %p116
      %p119 = scmp.ne.s32.totalorder %s102, %s118
      %p120 = scmp.eq.s32.totalorder %s26, 0
      %p121 = por %p119, %p120
      %s122 = ssub.s32 %s27, %s39
      %s123 = ssub.s32 %s28, %s35
      %s124 = sor.u32 %s122, %s123
      %p125 = scmp.eq.s32.totalorder %s124, 0
      %s127 = sadd.s32 %s126, 1
      %s128 = scalar_select %p125, %s126, %s127
      %p131 = pneg %p125
      %p132 = scmp.eq.s32.totalorder %s20, 1
      %p133 = por %p131, %p132
      %p134 = scmp.ne.s32.totalorder %s126, %s129
      %p135 = scmp.eq.s32.totalorder %s20, 0
      %p136 = por %p134, %p135
      %p137 = scmp.ne.s32.totalorder %s126, %s129
      %p138 = scmp.eq.s32.totalorder %s25, 1
      %p139 = por %p137, %p138
      %p140 = scmp.ne.s32.totalorder %s129, %s130
      %p141 = scmp.eq.s32.totalorder %s25, 0
      %p142 = por %p140, %p141
      %p143 = scmp.ne.s32.totalorder %s129, %s130
      %p144 = scmp.eq.s32.totalorder %s26, 1
      %p145 = por %p143, %p144
      %p147 = scmp.ne.s32.totalorder %s130, %s146
      %p148 = scmp.eq.s32.totalorder %s26, 0
      %p149 = por %p147, %p148
      %p150 = scmp.le.s32.totalorder 1, %s20
      %p151 = scmp.lt.s32.totalorder %s20, 3
      %p152 = pnand %p150, %p151
      %p153 = pneg %p152
      // Predicated region
      $region9: #{tpu_custom_call.1} parent=5 // pred_check
        _
      $region10: #{tpu_custom_call.1} parent=5 // pred_check_branch
        %155 = sbr.rel (%p152) target = $region12
      $region11: #{tpu_custom_call.1} parent=5 // pred_region
        %s156 = ssub.s32 %s20, 1
        // Predicated region
        $region13: #{tpu_custom_call.1} parent=11 // pred_check
          %p157 = pneg %p86
        $region14: #{tpu_custom_call.1} parent=11 // pred_check_branch
          %159 = sbr.rel (%p157) target = $region16
        $region15: #{tpu_custom_call.1} parent=11 // pred_region
          %s160 = smul.u32 2, %s30
          %s162 = ssub.s32 64, 64
          %163 = vsyncadd [#allocation6], %s162
          %s164 = smul.addr %s160, 32
          %s165 = scalar_lea.hbm %s1, %s164
          %s167 = sshll.u32 [#allocation5], 4
          %s168 = int_to_ptr.vmem [resolvable:$true] %s167
          %170 = dma.hbm_to_vmem [thread:$0]  %s165, 64, %s168, [#allocation6]
        $region16: #{tpu_custom_call.1} parent=11 // pred_fallthru
          _
      $region12: #{tpu_custom_call.1} parent=5 // pred_fallthru
        _
      %p171 = scmp.lt.s32.totalorder %s20, 2
      // Predicated region
      $region17: #{tpu_custom_call.1} parent=5 // pred_check
        %p172 = pneg %p171
      $region18: #{tpu_custom_call.1} parent=5 // pred_check_branch
        %174 = sbr.rel (%p172) target = $region20
      $region19: #{tpu_custom_call.1} parent=5 // pred_region
        // Predicated region
        $region21: #{tpu_custom_call.1} parent=19 // pred_check
          %p175 = pneg %p54
        $region22: #{tpu_custom_call.1} parent=19 // pred_check_branch
          %177 = sbr.rel (%p175) target = $region24
        $region23: #{tpu_custom_call.1} parent=19 // pred_region
          %s178 = sand.u32 %s44, 1
          %s179 = scalar_lea.sflag [#allocation3], %s178
          %s180 = sand.u32 %s44, 1
          %s181 = smul.addr %s180, 96
          %s182 = scalar_lea.vmem [#allocation2], %s181
          %s183 = smul.u32 2, %s28
          %s185 = ssub.s32 1536, 1536
          %186 = vsyncadd %s179, %s185
          %s187 = smul.addr %s27, 12
          %s188 = sadd.s32 %s183, %s187
          %s189 = smul.addr %s188, 128
          %s190 = scalar_lea.hbm %s0, %s189
          %s191 = sshll.u32 %s182, 4
          %s192 = int_to_ptr.vmem [resolvable:$true] %s191
          %197 = dma.hbm_to_vmem [thread:$0]  %s190, 1536, %s192, %s179, 256, 256, 16
        $region24: #{tpu_custom_call.1} parent=19 // pred_fallthru
          _
      $region20: #{tpu_custom_call.1} parent=5 // pred_fallthru
        _
      %p198 = scmp.le.s32.totalorder 1, %s20
      %p199 = scmp.lt.s32.totalorder %s20, 3
      %p200 = pnand %p198, %p199
      %p201 = pneg %p200
      // Predicated region
      $region25: #{tpu_custom_call.1} parent=5 // pred_check
        _
      $region26: #{tpu_custom_call.1} parent=5 // pred_check_branch
        %203 = sbr.rel (%p200) target = $region28
      $region27: #{tpu_custom_call.1} parent=5 // pred_region
        %s204 = ssub.s32 %s20, 1
        %s205 = sand.u32 %s47, 1
        %s206 = scalar_lea.sflag [#allocation3], %s205
        %s207 = sand.u32 %s47, 1
        %s208 = smul.addr %s207, 96
        %s209 = scalar_lea.vmem [#allocation2], %s208
        // Predicated region
        $region29: #{tpu_custom_call.1} parent=27 // pred_check
          %p210 = pneg %p60
        $region30: #{tpu_custom_call.1} parent=27 // pred_check_branch
          %212 = sbr.rel (%p210) target = $region32
        $region31: #{tpu_custom_call.1} parent=27 // pred_region
          %213 = dma.done %s206, 1536
        $region32: #{tpu_custom_call.1} parent=27 // pred_fallthru
          _
        // Predicated region
        $region33: #{tpu_custom_call.1} parent=27 // pred_check
          %p214 = pneg %p86
        $region34: #{tpu_custom_call.1} parent=27 // pred_check_branch
          %216 = sbr.rel (%p214) target = $region36
        $region35: #{tpu_custom_call.1} parent=27 // pred_region
          %217 = dma.done [#allocation6], 64
        $region36: #{tpu_custom_call.1} parent=27 // pred_fallthru
          _
        %s218 = sand.u32 %s47, 1
        %s219 = scalar_lea.sflag [#allocation3], %s218
        %s220 = sand.u32 %s47, 1
        %s221 = smul.addr %s220, 96
        %s222 = scalar_lea.vmem [#allocation2], %s221
        %p223 = pneg %p60
        %p224 = pneg %p57
        %p225 = pneg %p86
        %p226 = pneg %p83
        %p227 = pneg %p114
        %p228 = pneg %p111
        %s229 = sand.u32 %s101, 1
        %s230 = scalar_lea.sflag [#allocation4], %s229
        %s231 = sand.u32 %s101, 1
        %s232 = smul.addr %s231, 96
        %s233 = scalar_lea.vmem [#allocation7], %s232
        %p234 = pneg %p142
        %p235 = pneg %p139
        %s236 = sand.u32 %s129, 1
        %s237 = scalar_lea.sflag [#allocation9], %s236
        %s238 = sand.u32 %s129, 1
        %s239 = smul.addr %s238, 16
        %s240 = scalar_lea.vmem [#allocation8], %s239
        %s241 = smul.u32 2, %s30
        %s242 = smul.u32 2, %s30
        %s243 = smul.u32 2, %s30
        %s244 = smul.u32 2, %s30
        %v245 = vld [vmem:[%s209] sm:$0xff]
        %v246 = vld [vmem:[%s209 + $0x8] sm:$0xff]
        %v247 = vld [vmem:[%s209 + $0x10] sm:$0xff]
        %v248 = vld [vmem:[%s209 + $0x18] sm:$0xff]
        %v249 = vld [vmem:[%s209 + $0x20] sm:$0xff]
        %v250 = vld [vmem:[%s209 + $0x28] sm:$0xff]
        %v251 = vld [vmem:[%s209 + $0x30] sm:$0xff]
        %v252 = vld [vmem:[%s209 + $0x38] sm:$0xff]
        %v253 = vld [vmem:[%s209 + $0x40] sm:$0xff]
        %v254 = vld [vmem:[%s209 + $0x48] sm:$0xff]
        %v255 = vld [vmem:[%s209 + $0x50] sm:$0xff]
        %v256 = vld [vmem:[%s209 + $0x58] sm:$0xff]
        %v257 = vxor.u32 %v245, 2147483648
        %v258 = vxor.u32 %v246, 2147483648
        %v259 = vxor.u32 %v247, 2147483648
        %v260 = vxor.u32 %v248, 2147483648
        %v261 = vxor.u32 %v249, 2147483648
        %v262 = vxor.u32 %v250, 2147483648
        %v263 = vxor.u32 %v251, 2147483648
        %v264 = vxor.u32 %v252, 2147483648
        %v265 = vxor.u32 %v253, 2147483648
        %v266 = vxor.u32 %v254, 2147483648
        %v267 = vxor.u32 %v255, 2147483648
        %v268 = vxor.u32 %v256, 2147483648
        %v269 = vmul.f32 %v257, 1.442695
        %v270 = vpow.pop %v269
        %v271 = vmul.f32 %v258, 1.442695
        %v272 = vpow.pop %v271
        %v273 = vmul.f32 %v259, 1.442695
        %v274 = vpow.pop %v273
        %v275 = vmul.f32 %v260, 1.442695
        %v276 = vpow.pop %v275
        %v277 = vmul.f32 %v261, 1.442695
        %v278 = vpow.pop %v277
        %v279 = vmul.f32 %v262, 1.442695
        %v280 = vpow.pop %v279
        %v281 = vmul.f32 %v263, 1.442695
        %v282 = vpow.pop %v281
        %v283 = vmul.f32 %v264, 1.442695
        %v284 = vpow.pop %v283
        %v285 = vmul.f32 %v265, 1.442695
        %v286 = vpow.pop %v285
        %v287 = vmul.f32 %v266, 1.442695
        %v288 = vpow.pop %v287
        %v289 = vmul.f32 %v267, 1.442695
        %v290 = vpow.pop %v289
        %v291 = vmul.f32 %v268, 1.442695
        %v292 = vpow.pop %v291
        %v293 = vadd.f32 %v270, 1.0
        %v294 = vadd.f32 %v272, 1.0
        %v295 = vadd.f32 %v274, 1.0
        %v296 = vadd.f32 %v276, 1.0
        %v297 = vadd.f32 %v278, 1.0
        %v298 = vadd.f32 %v280, 1.0
        %v299 = vadd.f32 %v282, 1.0
        %v300 = vadd.f32 %v284, 1.0
        %v301 = vadd.f32 %v286, 1.0
        %v302 = vadd.f32 %v288, 1.0
        %v303 = vadd.f32 %v290, 1.0
        %v304 = vadd.f32 %v292, 1.0
        %v305 = vrcp.pop %v293
        %v306 = vmul.f32 1.0, %v305
        %v307 = vrcp.pop %v294
        %v308 = vmul.f32 1.0, %v307
        %v309 = vrcp.pop %v295
        %v310 = vmul.f32 1.0, %v309
        %v311 = vrcp.pop %v296
        %v312 = vmul.f32 1.0, %v311
        %v313 = vrcp.pop %v297
        %v314 = vmul.f32 1.0, %v313
        %v315 = vrcp.pop %v298
        %v316 = vmul.f32 1.0, %v315
        %v317 = vrcp.pop %v299
        %v318 = vmul.f32 1.0, %v317
        %v319 = vrcp.pop %v300
        %v320 = vmul.f32 1.0, %v319
        %v321 = vrcp.pop %v301
        %v322 = vmul.f32 1.0, %v321
        %v323 = vrcp.pop %v302
        %v324 = vmul.f32 1.0, %v323
        %v325 = vrcp.pop %v303
        %v326 = vmul.f32 1.0, %v325
        %v327 = vrcp.pop %v304
        %v328 = vmul.f32 1.0, %v327
        %329 = vst [vmem:[%s233] sm:$0xff] %v306
        %330 = vst [vmem:[%s233 + $0x8] sm:$0xff] %v308
        %331 = vst [vmem:[%s233 + $0x10] sm:$0xff] %v310
        %332 = vst [vmem:[%s233 + $0x18] sm:$0xff] %v312
        %333 = vst [vmem:[%s233 + $0x20] sm:$0xff] %v314
        %334 = vst [vmem:[%s233 + $0x28] sm:$0xff] %v316
        %335 = vst [vmem:[%s233 + $0x30] sm:$0xff] %v318
        %336 = vst [vmem:[%s233 + $0x38] sm:$0xff] %v320
        %337 = vst [vmem:[%s233 + $0x40] sm:$0xff] %v322
        %338 = vst [vmem:[%s233 + $0x48] sm:$0xff] %v324
        %339 = vst [vmem:[%s233 + $0x50] sm:$0xff] %v326
        %340 = vst [vmem:[%s233 + $0x58] sm:$0xff] %v328
        %v341 = vld [vmem:[#allocation5] ss:$2 sm:$0x3]
        %s342 = scalar_lea.vmem [#allocation5], 1
        %v343 = vld [vmem:[%s342] ss:$2 sm:$0x3]
        %v344 = vmul.f32 %v306, 2.0
        %v345 = vmul.f32 %v308, 2.0
        %v346 = vsub.f32 %v344, 0.5
        %v347 = vsub.f32 %v345, 0.5
        %v349 = vlaneseq
        %v350 = vshrl.u32 %v349, 7
        %v351 = vsub.s32 0, %v350
        %v352 = vrot.slane %v341, %v351
        %v353 = vlaneseq
        %v354 = vshrl.u32 %v353, 7
        %v355 = vsub.s32 1, %v354
        %v356 = vrot.slane %v341, %v355
        %v359 = vadd.f32 %v346, %v352
        %v360 = vadd.f32 %v347, %v356
        %v361 = vmul.f32 %v359, 16.0
        %v362 = vmul.f32 %v360, 16.0
        %v365 = vcombine.low %v361, %v362
        %v367 = vunpack.c.l.s4 1966171168
        %v368 = vunpack.c.0.s8 %v367
        %v369 = vlaneseq
        %v370 = vshrl.u32 %v369, 7
        %v371 = vsub.s32 %v368, %v370
        %v372 = vrot.slane %v365, %v371
        %v374 = vunpack.c.l.s4 1966171168
        %v375 = vunpack.c.0.s8 %v374
        %v376 = vlaneseq
        %v377 = vshrl.u32 %v376, 7
        %v378 = vsub.s32 %v375, %v377
        %v379 = vrot.slane %v372, %v378
        %v381 = vlaneseq
        %vm382 = vcmp.ge.s32.totalorder %v381, 0
        %vm383 = vcmp.lt.s32.totalorder %v381, 256
        %vm384 = vmand %vm382, %vm383
        %385 = vst.msk [vmem:[%s233] ss:$8 sm:$0x3] %vm384, %v379
        %386 = vst.msk [vmem:[%s233] ss:$8 sm:$0x0] %vm384, %v379
        %v388 = vlaneseq
        %v389 = vshrl.u32 %v388, 7
        %v390 = vsub.s32 0, %v389
        %v391 = vrot.slane %v343, %v390
        %v392 = vlaneseq
        %v393 = vshrl.u32 %v392, 7
        %v394 = vsub.s32 1, %v393
        %v395 = vrot.slane %v343, %v394
        %v398 = vadd.f32 %v346, %v391
        %v399 = vadd.f32 %v347, %v395
        %v400 = vmul.f32 %v398, 16.0
        %v401 = vmul.f32 %v399, 16.0
        %v404 = vcombine.low %v400, %v401
        %v406 = vunpack.c.l.s4 1966171168
        %v407 = vunpack.c.0.s8 %v406
        %v408 = vlaneseq
        %v409 = vshrl.u32 %v408, 7
        %v410 = vsub.s32 %v407, %v409
        %v411 = vrot.slane %v404, %v410
        %v412 = vcombine.high %v411, %v411
        %v414 = vunpack.c.l.s4 1966171168
        %v415 = vunpack.c.0.s8 %v414
        %v416 = vlaneseq
        %v417 = vshrl.u32 %v416, 7
        %v418 = vsub.s32 %v415, %v417
        %v419 = vrot.slane %v412, %v418
        %s421 = scalar_lea.vmem %s233, 1 [#allocation7]
        %422 = vst.msk [vmem:[%s421] ss:$8 sm:$0x3] %vm384, %v419
        %423 = vst.msk [vmem:[%s421] ss:$8 sm:$0x0] %vm384, %v419
        %v424 = vmul.f32 %v344, %v344
        %v425 = vmul.f32 %v345, %v345
        %v426 = vmul.f32 %v424, 10.0
        %v427 = vmul.f32 %v425, 10.0
        %v430 = vcombine.low %v426, %v427
        %v432 = vunpack.c.l.s4 1966171168
        %v433 = vunpack.c.0.s8 %v432
        %v434 = vlaneseq
        %v435 = vshrl.u32 %v434, 7
        %v436 = vsub.s32 %v433, %v435
        %v437 = vrot.slane %v430, %v436
        %v439 = vunpack.c.l.s4 1966171168
        %v440 = vunpack.c.0.s8 %v439
        %v441 = vlaneseq
        %v442 = vshrl.u32 %v441, 7
        %v443 = vsub.s32 %v440, %v442
        %v444 = vrot.slane %v437, %v443
        %v445 = vcombine.high %v444, %v444
        %s447 = scalar_lea.vmem %s233, 2 [#allocation7]
        %448 = vst.msk [vmem:[%s447] ss:$8 sm:$0x3] %vm384, %v445
        %449 = vst.msk [vmem:[%s447] ss:$8 sm:$0x0] %vm384, %v445
        %v450 = vmul.f32 %v424, 13.0
        %v451 = vmul.f32 %v425, 13.0
        %v454 = vcombine.low %v450, %v451
        %v456 = vunpack.c.l.s4 1966171168
        %v457 = vunpack.c.0.s8 %v456
        %v458 = vlaneseq
        %v459 = vshrl.u32 %v458, 7
        %v460 = vsub.s32 %v457, %v459
        %v461 = vrot.slane %v454, %v460
        %v462 = vcombine.high %v461, %v461
        %v464 = vunpack.c.l.s4 1966171168
        %v465 = vunpack.c.0.s8 %v464
        %v466 = vlaneseq
        %v467 = vshrl.u32 %v466, 7
        %v468 = vsub.s32 %v465, %v467
        %v469 = vrot.slane %v462, %v468
        %v470 = vcombine.high %v469, %v469
        %s472 = scalar_lea.vmem %s233, 3 [#allocation7]
        %473 = vst.msk [vmem:[%s472] ss:$8 sm:$0x3] %vm384, %v470
        %474 = vst.msk [vmem:[%s472] ss:$8 sm:$0x0] %vm384, %v470
        %v475 = vmul.f32 %v310, 2.0
        %v476 = vmul.f32 %v312, 2.0
        %v477 = vsub.f32 %v475, 0.5
        %v478 = vsub.f32 %v476, 0.5
        %v479 = vadd.f32 %v477, %v352
        %v480 = vadd.f32 %v478, %v356
        %v481 = vmul.f32 %v479, 16.0
        %v482 = vmul.f32 %v480, 16.0
        %v485 = vcombine.low %v481, %v482
        %v487 = vunpack.c.l.s4 1966171168
        %v488 = vunpack.c.0.s8 %v487
        %v489 = vlaneseq
        %v490 = vshrl.u32 %v489, 7
        %v491 = vsub.s32 %v488, %v490
        %v492 = vrot.slane %v485, %v491
        %v494 = vunpack.c.l.s4 1966171168
        %v495 = vunpack.c.0.s8 %v494
        %v496 = vlaneseq
        %v497 = vshrl.u32 %v496, 7
        %v498 = vsub.s32 %v495, %v497
        %v499 = vrot.slane %v492, %v498
        %s501 = scalar_lea.vmem %s233, 16 [#allocation7]
        %502 = vst.msk [vmem:[%s501] ss:$8 sm:$0x3] %vm384, %v499
        %503 = vst.msk [vmem:[%s501] ss:$8 sm:$0x0] %vm384, %v499
        %v504 = vadd.f32 %v477, %v391
        %v505 = vadd.f32 %v478, %v395
        %v506 = vmul.f32 %v504, 16.0
        %v507 = vmul.f32 %v505, 16.0
        %v510 = vcombine.low %v506, %v507
        %v512 = vunpack.c.l.s4 1966171168
        %v513 = vunpack.c.0.s8 %v512
        %v514 = vlaneseq
        %v515 = vshrl.u32 %v514, 7
        %v516 = vsub.s32 %v513, %v515
        %v517 = vrot.slane %v510, %v516
        %v518 = vcombine.high %v517, %v517
        %v520 = vunpack.c.l.s4 1966171168
        %v521 = vunpack.c.0.s8 %v520
        %v522 = vlaneseq
        %v523 = vshrl.u32 %v522, 7
        %v524 = vsub.s32 %v521, %v523
        %v525 = vrot.slane %v518, %v524
        %s527 = scalar_lea.vmem %s501, 1 [#allocation7]
        %528 = vst.msk [vmem:[%s527] ss:$8 sm:$0x3] %vm384, %v525
        %529 = vst.msk [vmem:[%s527] ss:$8 sm:$0x0] %vm384, %v525
        %v530 = vmul.f32 %v475, %v475
        %v531 = vmul.f32 %v476, %v476
        %v532 = vmul.f32 %v530, 16.0
        %v533 = vmul.f32 %v531, 16.0
        %v536 = vcombine.low %v532, %v533
        %v538 = vunpack.c.l.s4 1966171168
        %v539 = vunpack.c.0.s8 %v538
        %v540 = vlaneseq
        %v541 = vshrl.u32 %v540, 7
        %v542 = vsub.s32 %v539, %v541
        %v543 = vrot.slane %v536, %v542
        %v545 = vunpack.c.l.s4 1966171168
        %v546 = vunpack.c.0.s8 %v545
        %v547 = vlaneseq
        %v548 = vshrl.u32 %v547, 7
        %v549 = vsub.s32 %v546, %v548
        %v550 = vrot.slane %v543, %v549
        %v551 = vcombine.high %v550, %v550
        %s553 = scalar_lea.vmem %s501, 2 [#allocation7]
        %554 = vst.msk [vmem:[%s553] ss:$8 sm:$0x3] %vm384, %v551
        %555 = vst.msk [vmem:[%s553] ss:$8 sm:$0x0] %vm384, %v551
        %v556 = vmul.f32 %v530, 30.0
        %v557 = vmul.f32 %v531, 30.0
        %v560 = vcombine.low %v556, %v557
        %v562 = vunpack.c.l.s4 1966171168
        %v563 = vunpack.c.0.s8 %v562
        %v564 = vlaneseq
        %v565 = vshrl.u32 %v564, 7
        %v566 = vsub.s32 %v563, %v565
        %v567 = vrot.slane %v560, %v566
        %v568 = vcombine.high %v567, %v567
        %v570 = vunpack.c.l.s4 1966171168
        %v571 = vunpack.c.0.s8 %v570
        %v572 = vlaneseq
        %v573 = vshrl.u32 %v572, 7
        %v574 = vsub.s32 %v571, %v573
        %v575 = vrot.slane %v568, %v574
        %v576 = vcombine.high %v575, %v575
        %s578 = scalar_lea.vmem %s501, 3 [#allocation7]
        %579 = vst.msk [vmem:[%s578] ss:$8 sm:$0x3] %vm384, %v576
        %580 = vst.msk [vmem:[%s578] ss:$8 sm:$0x0] %vm384, %v576
        %v581 = vmul.f32 %v314, 2.0
        %v582 = vmul.f32 %v316, 2.0
        %v583 = vsub.f32 %v581, 0.5
        %v584 = vsub.f32 %v582, 0.5
        %v585 = vadd.f32 %v583, %v352
        %v586 = vadd.f32 %v584, %v356
        %v587 = vmul.f32 %v585, 16.0
        %v588 = vmul.f32 %v586, 16.0
        %v591 = vcombine.low %v587, %v588
        %v593 = vunpack.c.l.s4 1966171168
        %v594 = vunpack.c.0.s8 %v593
        %v595 = vlaneseq
        %v596 = vshrl.u32 %v595, 7
        %v597 = vsub.s32 %v594, %v596
        %v598 = vrot.slane %v591, %v597
        %v600 = vunpack.c.l.s4 1966171168
        %v601 = vunpack.c.0.s8 %v600
        %v602 = vlaneseq
        %v603 = vshrl.u32 %v602, 7
        %v604 = vsub.s32 %v601, %v603
        %v605 = vrot.slane %v598, %v604
        %s607 = scalar_lea.vmem %s233, 32 [#allocation7]
        %608 = vst.msk [vmem:[%s607] ss:$8 sm:$0x3] %vm384, %v605
        %609 = vst.msk [vmem:[%s607] ss:$8 sm:$0x0] %vm384, %v605
        %v610 = vadd.f32 %v583, %v391
        %v611 = vadd.f32 %v584, %v395
        %v612 = vmul.f32 %v610, 16.0
        %v613 = vmul.f32 %v611, 16.0
        %v616 = vcombine.low %v612, %v613
        %v618 = vunpack.c.l.s4 1966171168
        %v619 = vunpack.c.0.s8 %v618
        %v620 = vlaneseq
        %v621 = vshrl.u32 %v620, 7
        %v622 = vsub.s32 %v619, %v621
        %v623 = vrot.slane %v616, %v622
        %v624 = vcombine.high %v623, %v623
        %v626 = vunpack.c.l.s4 1966171168
        %v627 = vunpack.c.0.s8 %v626
        %v628 = vlaneseq
        %v629 = vshrl.u32 %v628, 7
        %v630 = vsub.s32 %v627, %v629
        %v631 = vrot.slane %v624, %v630
        %s633 = scalar_lea.vmem %s607, 1 [#allocation7]
        %634 = vst.msk [vmem:[%s633] ss:$8 sm:$0x3] %vm384, %v631
        %635 = vst.msk [vmem:[%s633] ss:$8 sm:$0x0] %vm384, %v631
        %v636 = vmul.f32 %v581, %v581
        %v637 = vmul.f32 %v582, %v582
        %v638 = vmul.f32 %v636, 33.0
        %v639 = vmul.f32 %v637, 33.0
        %v642 = vcombine.low %v638, %v639
        %v644 = vunpack.c.l.s4 1966171168
        %v645 = vunpack.c.0.s8 %v644
        %v646 = vlaneseq
        %v647 = vshrl.u32 %v646, 7
        %v648 = vsub.s32 %v645, %v647
        %v649 = vrot.slane %v642, %v648
        %v651 = vunpack.c.l.s4 1966171168
        %v652 = vunpack.c.0.s8 %v651
        %v653 = vlaneseq
        %v654 = vshrl.u32 %v653, 7
        %v655 = vsub.s32 %v652, %v654
        %v656 = vrot.slane %v649, %v655
        %v657 = vcombine.high %v656, %v656
        %s659 = scalar_lea.vmem %s607, 2 [#allocation7]
        %660 = vst.msk [vmem:[%s659] ss:$8 sm:$0x3] %vm384, %v657
        %661 = vst.msk [vmem:[%s659] ss:$8 sm:$0x0] %vm384, %v657
        %v662 = vmul.f32 %v636, 23.0
        %v663 = vmul.f32 %v637, 23.0
        %v666 = vcombine.low %v662, %v663
        %v668 = vunpack.c.l.s4 1966171168
        %v669 = vunpack.c.0.s8 %v668
        %v670 = vlaneseq
        %v671 = vshrl.u32 %v670, 7
        %v672 = vsub.s32 %v669, %v671
        %v673 = vrot.slane %v666, %v672
        %v674 = vcombine.high %v673, %v673
        %v676 = vunpack.c.l.s4 1966171168
        %v677 = vunpack.c.0.s8 %v676
        %v678 = vlaneseq
        %v679 = vshrl.u32 %v678, 7
        %v680 = vsub.s32 %v677, %v679
        %v681 = vrot.slane %v674, %v680
        %v682 = vcombine.high %v681, %v681
        %s684 = scalar_lea.vmem %s607, 3 [#allocation7]
        %685 = vst.msk [vmem:[%s684] ss:$8 sm:$0x3] %vm384, %v682
        %686 = vst.msk [vmem:[%s684] ss:$8 sm:$0x0] %vm384, %v682
        %v687 = vmul.f32 %v318, 2.0
        %v688 = vmul.f32 %v320, 2.0
        %v689 = vsub.f32 %v687, 0.5
        %v690 = vsub.f32 %v688, 0.5
        %v691 = vadd.f32 %v689, %v352
        %v692 = vadd.f32 %v690, %v356
        %v693 = vmul.f32 %v691, 16.0
        %v694 = vmul.f32 %v692, 16.0
        %v697 = vcombine.low %v693, %v694
        %v699 = vunpack.c.l.s4 1966171168
        %v700 = vunpack.c.0.s8 %v699
        %v701 = vlaneseq
        %v702 = vshrl.u32 %v701, 7
        %v703 = vsub.s32 %v700, %v702
        %v704 = vrot.slane %v697, %v703
        %v706 = vunpack.c.l.s4 1966171168
        %v707 = vunpack.c.0.s8 %v706
        %v708 = vlaneseq
        %v709 = vshrl.u32 %v708, 7
        %v710 = vsub.s32 %v707, %v709
        %v711 = vrot.slane %v704, %v710
        %s713 = scalar_lea.vmem %s233, 48 [#allocation7]
        %714 = vst.msk [vmem:[%s713] ss:$8 sm:$0x3] %vm384, %v711
        %715 = vst.msk [vmem:[%s713] ss:$8 sm:$0x0] %vm384, %v711
        %v716 = vadd.f32 %v689, %v391
        %v717 = vadd.f32 %v690, %v395
        %v718 = vmul.f32 %v716, 16.0
        %v719 = vmul.f32 %v717, 16.0
        %v722 = vcombine.low %v718, %v719
        %v724 = vunpack.c.l.s4 1966171168
        %v725 = vunpack.c.0.s8 %v724
        %v726 = vlaneseq
        %v727 = vshrl.u32 %v726, 7
        %v728 = vsub.s32 %v725, %v727
        %v729 = vrot.slane %v722, %v728
        %v730 = vcombine.high %v729, %v729
        %v732 = vunpack.c.l.s4 1966171168
        %v733 = vunpack.c.0.s8 %v732
        %v734 = vlaneseq
        %v735 = vshrl.u32 %v734, 7
        %v736 = vsub.s32 %v733, %v735
        %v737 = vrot.slane %v730, %v736
        %s739 = scalar_lea.vmem %s713, 1 [#allocation7]
        %740 = vst.msk [vmem:[%s739] ss:$8 sm:$0x3] %vm384, %v737
        %741 = vst.msk [vmem:[%s739] ss:$8 sm:$0x0] %vm384, %v737
        %v742 = vmul.f32 %v687, %v687
        %v743 = vmul.f32 %v688, %v688
        %v744 = vmul.f32 %v742, 30.0
        %v745 = vmul.f32 %v743, 30.0
        %v748 = vcombine.low %v744, %v745
        %v750 = vunpack.c.l.s4 1966171168
        %v751 = vunpack.c.0.s8 %v750
        %v752 = vlaneseq
        %v753 = vshrl.u32 %v752, 7
        %v754 = vsub.s32 %v751, %v753
        %v755 = vrot.slane %v748, %v754
        %v757 = vunpack.c.l.s4 1966171168
        %v758 = vunpack.c.0.s8 %v757
        %v759 = vlaneseq
        %v760 = vshrl.u32 %v759, 7
        %v761 = vsub.s32 %v758, %v760
        %v762 = vrot.slane %v755, %v761
        %v763 = vcombine.high %v762, %v762
        %s765 = scalar_lea.vmem %s713, 2 [#allocation7]
        %766 = vst.msk [vmem:[%s765] ss:$8 sm:$0x3] %vm384, %v763
        %767 = vst.msk [vmem:[%s765] ss:$8 sm:$0x0] %vm384, %v763
        %v768 = vmul.f32 %v742, 61.0
        %v769 = vmul.f32 %v743, 61.0
        %v772 = vcombine.low %v768, %v769
        %v774 = vunpack.c.l.s4 1966171168
        %v775 = vunpack.c.0.s8 %v774
        %v776 = vlaneseq
        %v777 = vshrl.u32 %v776, 7
        %v778 = vsub.s32 %v775, %v777
        %v779 = vrot.slane %v772, %v778
        %v780 = vcombine.high %v779, %v779
        %v782 = vunpack.c.l.s4 1966171168
        %v783 = vunpack.c.0.s8 %v782
        %v784 = vlaneseq
        %v785 = vshrl.u32 %v784, 7
        %v786 = vsub.s32 %v783, %v785
        %v787 = vrot.slane %v780, %v786
        %v788 = vcombine.high %v787, %v787
        %s790 = scalar_lea.vmem %s713, 3 [#allocation7]
        %791 = vst.msk [vmem:[%s790] ss:$8 sm:$0x3] %vm384, %v788
        %792 = vst.msk [vmem:[%s790] ss:$8 sm:$0x0] %vm384, %v788
        %v793 = vmul.f32 %v322, 2.0
        %v794 = vmul.f32 %v324, 2.0
        %v795 = vsub.f32 %v793, 0.5
        %v796 = vsub.f32 %v794, 0.5
        %v797 = vadd.f32 %v795, %v352
        %v798 = vadd.f32 %v796, %v356
        %v799 = vmul.f32 %v797, 16.0
        %v800 = vmul.f32 %v798, 16.0
        %v803 = vcombine.low %v799, %v800
        %v805 = vunpack.c.l.s4 1966171168
        %v806 = vunpack.c.0.s8 %v805
        %v807 = vlaneseq
        %v808 = vshrl.u32 %v807, 7
        %v809 = vsub.s32 %v806, %v808
        %v810 = vrot.slane %v803, %v809
        %v812 = vunpack.c.l.s4 1966171168
        %v813 = vunpack.c.0.s8 %v812
        %v814 = vlaneseq
        %v815 = vshrl.u32 %v814, 7
        %v816 = vsub.s32 %v813, %v815
        %v817 = vrot.slane %v810, %v816
        %s819 = scalar_lea.vmem %s233, 64 [#allocation7]
        %820 = vst.msk [vmem:[%s819] ss:$8 sm:$0x3] %vm384, %v817
        %821 = vst.msk [vmem:[%s819] ss:$8 sm:$0x0] %vm384, %v817
        %v822 = vadd.f32 %v795, %v391
        %v823 = vadd.f32 %v796, %v395
        %v824 = vmul.f32 %v822, 16.0
        %v825 = vmul.f32 %v823, 16.0
        %v828 = vcombine.low %v824, %v825
        %v830 = vunpack.c.l.s4 1966171168
        %v831 = vunpack.c.0.s8 %v830
        %v832 = vlaneseq
        %v833 = vshrl.u32 %v832, 7
        %v834 = vsub.s32 %v831, %v833
        %v835 = vrot.slane %v828, %v834
        %v836 = vcombine.high %v835, %v835
        %v838 = vunpack.c.l.s4 1966171168
        %v839 = vunpack.c.0.s8 %v838
        %v840 = vlaneseq
        %v841 = vshrl.u32 %v840, 7
        %v842 = vsub.s32 %v839, %v841
        %v843 = vrot.slane %v836, %v842
        %s845 = scalar_lea.vmem %s819, 1 [#allocation7]
        %846 = vst.msk [vmem:[%s845] ss:$8 sm:$0x3] %vm384, %v843
        %847 = vst.msk [vmem:[%s845] ss:$8 sm:$0x0] %vm384, %v843
        %v848 = vmul.f32 %v793, %v793
        %v849 = vmul.f32 %v794, %v794
        %v850 = vmul.f32 %v848, 62.0
        %v851 = vmul.f32 %v849, 62.0
        %v854 = vcombine.low %v850, %v851
        %v856 = vunpack.c.l.s4 1966171168
        %v857 = vunpack.c.0.s8 %v856
        %v858 = vlaneseq
        %v859 = vshrl.u32 %v858, 7
        %v860 = vsub.s32 %v857, %v859
        %v861 = vrot.slane %v854, %v860
        %v863 = vunpack.c.l.s4 1966171168
        %v864 = vunpack.c.0.s8 %v863
        %v865 = vlaneseq
        %v866 = vshrl.u32 %v865, 7
        %v867 = vsub.s32 %v864, %v866
        %v868 = vrot.slane %v861, %v867
        %v869 = vcombine.high %v868, %v868
        %s871 = scalar_lea.vmem %s819, 2 [#allocation7]
        %872 = vst.msk [vmem:[%s871] ss:$8 sm:$0x3] %vm384, %v869
        %873 = vst.msk [vmem:[%s871] ss:$8 sm:$0x0] %vm384, %v869
        %v874 = vmul.f32 %v848, 45.0
        %v875 = vmul.f32 %v849, 45.0
        %v878 = vcombine.low %v874, %v875
        %v880 = vunpack.c.l.s4 1966171168
        %v881 = vunpack.c.0.s8 %v880
        %v882 = vlaneseq
        %v883 = vshrl.u32 %v882, 7
        %v884 = vsub.s32 %v881, %v883
        %v885 = vrot.slane %v878, %v884
        %v886 = vcombine.high %v885, %v885
        %v888 = vunpack.c.l.s4 1966171168
        %v889 = vunpack.c.0.s8 %v888
        %v890 = vlaneseq
        %v891 = vshrl.u32 %v890, 7
        %v892 = vsub.s32 %v889, %v891
        %v893 = vrot.slane %v886, %v892
        %v894 = vcombine.high %v893, %v893
        %s896 = scalar_lea.vmem %s819, 3 [#allocation7]
        %897 = vst.msk [vmem:[%s896] ss:$8 sm:$0x3] %vm384, %v894
        %898 = vst.msk [vmem:[%s896] ss:$8 sm:$0x0] %vm384, %v894
        %v899 = vmul.f32 %v326, 2.0
        %v900 = vmul.f32 %v328, 2.0
        %v901 = vsub.f32 %v899, 0.5
        %v902 = vsub.f32 %v900, 0.5
        %v903 = vadd.f32 %v901, %v352
        %v904 = vadd.f32 %v902, %v356
        %v905 = vmul.f32 %v903, 16.0
        %v906 = vmul.f32 %v904, 16.0
        %v909 = vcombine.low %v905, %v906
        %v911 = vunpack.c.l.s4 1966171168
        %v912 = vunpack.c.0.s8 %v911
        %v913 = vlaneseq
        %v914 = vshrl.u32 %v913, 7
        %v915 = vsub.s32 %v912, %v914
        %v916 = vrot.slane %v909, %v915
        %v918 = vunpack.c.l.s4 1966171168
        %v919 = vunpack.c.0.s8 %v918
        %v920 = vlaneseq
        %v921 = vshrl.u32 %v920, 7
        %v922 = vsub.s32 %v919, %v921
        %v923 = vrot.slane %v916, %v922
        %s925 = scalar_lea.vmem %s233, 80 [#allocation7]
        %926 = vst.msk [vmem:[%s925] ss:$8 sm:$0x3] %vm384, %v923
        %927 = vst.msk [vmem:[%s925] ss:$8 sm:$0x0] %vm384, %v923
        %v928 = vadd.f32 %v901, %v391
        %v929 = vadd.f32 %v902, %v395
        %v930 = vmul.f32 %v928, 16.0
        %v931 = vmul.f32 %v929, 16.0
        %v934 = vcombine.low %v930, %v931
        %v936 = vunpack.c.l.s4 1966171168
        %v937 = vunpack.c.0.s8 %v936
        %v938 = vlaneseq
        %v939 = vshrl.u32 %v938, 7
        %v940 = vsub.s32 %v937, %v939
        %v941 = vrot.slane %v934, %v940
        %v942 = vcombine.high %v941, %v941
        %v944 = vunpack.c.l.s4 1966171168
        %v945 = vunpack.c.0.s8 %v944
        %v946 = vlaneseq
        %v947 = vshrl.u32 %v946, 7
        %v948 = vsub.s32 %v945, %v947
        %v949 = vrot.slane %v942, %v948
        %s951 = scalar_lea.vmem %s925, 1 [#allocation7]
        %952 = vst.msk [vmem:[%s951] ss:$8 sm:$0x3] %vm384, %v949
        %953 = vst.msk [vmem:[%s951] ss:$8 sm:$0x0] %vm384, %v949
        %v954 = vmul.f32 %v899, %v899
        %v955 = vmul.f32 %v900, %v900
        %v956 = vmul.f32 %v954, 59.0
        %v957 = vmul.f32 %v955, 59.0
        %v960 = vcombine.low %v956, %v957
        %v962 = vunpack.c.l.s4 1966171168
        %v963 = vunpack.c.0.s8 %v962
        %v964 = vlaneseq
        %v965 = vshrl.u32 %v964, 7
        %v966 = vsub.s32 %v963, %v965
        %v967 = vrot.slane %v960, %v966
        %v969 = vunpack.c.l.s4 1966171168
        %v970 = vunpack.c.0.s8 %v969
        %v971 = vlaneseq
        %v972 = vshrl.u32 %v971, 7
        %v973 = vsub.s32 %v970, %v972
        %v974 = vrot.slane %v967, %v973
        %v975 = vcombine.high %v974, %v974
        %s977 = scalar_lea.vmem %s925, 2 [#allocation7]
        %978 = vst.msk [vmem:[%s977] ss:$8 sm:$0x3] %vm384, %v975
        %979 = vst.msk [vmem:[%s977] ss:$8 sm:$0x0] %vm384, %v975
        %v980 = vmul.f32 %v954, 119.0
        %v981 = vmul.f32 %v955, 119.0
        %v984 = vcombine.low %v980, %v981
        %v986 = vunpack.c.l.s4 1966171168
        %v987 = vunpack.c.0.s8 %v986
        %v988 = vlaneseq
        %v989 = vshrl.u32 %v988, 7
        %v990 = vsub.s32 %v987, %v989
        %v991 = vrot.slane %v984, %v990
        %v992 = vcombine.high %v991, %v991
        %v994 = vunpack.c.l.s4 1966171168
        %v995 = vunpack.c.0.s8 %v994
        %v996 = vlaneseq
        %v997 = vshrl.u32 %v996, 7
        %v998 = vsub.s32 %v995, %v997
        %v999 = vrot.slane %v992, %v998
        %v1000 = vcombine.high %v999, %v999
        %s1002 = scalar_lea.vmem %s925, 3 [#allocation7]
        %1003 = vst.msk [vmem:[%s1002] ss:$8 sm:$0x3] %vm384, %v1000
        %1004 = vst.msk [vmem:[%s1002] ss:$8 sm:$0x0] %vm384, %v1000
        %v1005 = vmul.f32 %v255, %v253
        %v1006 = vmul.f32 %v256, %v254
        %1007 = vst [vmem:[%s240] sm:$0xff] %v1005
        %1008 = vst [vmem:[%s240 + $0x8] sm:$0xff] %v1006
        %s1009 = sand.u32 %s101, 1
        %s1010 = scalar_lea.sflag [#allocation4], %s1009
        %s1011 = sand.u32 %s101, 1
        %s1012 = smul.addr %s1011, 96
        %s1013 = scalar_lea.vmem [#allocation7], %s1012
        %s1014 = sand.u32 %s129, 1
        %s1015 = scalar_lea.sflag [#allocation9], %s1014
        %s1016 = sand.u32 %s129, 1
        %s1017 = smul.addr %s1016, 16
        %s1018 = scalar_lea.vmem [#allocation8], %s1017
        // Predicated region
        $region37: #{tpu_custom_call.1} parent=27 // pred_check
          %p1019 = pneg %p111
        $region38: #{tpu_custom_call.1} parent=27 // pred_check_branch
          %1021 = sbr.rel (%p1019) target = $region40
        $region39: #{tpu_custom_call.1} parent=27 // pred_region
          %s1022 = smul.u32 2, %s30
          %s1024 = ssub.s32 1536, 1536
          %1025 = vsyncadd %s1010, %s1024
          %s1026 = smul.addr %s29, 12
          %s1027 = sadd.s32 %s1022, %s1026
          %s1028 = smul.addr %s1027, 128
          %s1029 = scalar_lea.hbm %s2, %s1028
          %s1030 = sshll.u32 %s1013, 4
          %s1031 = int_to_ptr.vmem [resolvable:$true] %s1030
          %1036 = dma.vmem_to_hbm [thread:$0]  %s1031, 1536, %s1029, %s1010, 256, 256, 16
        $region40: #{tpu_custom_call.1} parent=27 // pred_fallthru
          _
        // Predicated region
        $region41: #{tpu_custom_call.1} parent=27 // pred_check
          %p1037 = pneg %p139
        $region42: #{tpu_custom_call.1} parent=27 // pred_check_branch
          %1039 = sbr.rel (%p1037) target = $region44
        $region43: #{tpu_custom_call.1} parent=27 // pred_region
          %s1040 = smul.u32 2, %s30
          %s1042 = ssub.s32 256, 256
          %1043 = vsyncadd %s1015, %s1042
          %s1044 = smul.addr %s29, 2
          %s1045 = sadd.s32 %s1040, %s1044
          %s1046 = smul.addr %s1045, 128
          %s1047 = scalar_lea.hbm %s3, %s1046
          %s1049 = sshll.u32 %s1018, 4
          %s1050 = int_to_ptr.vmem [resolvable:$true] %s1049
          %1052 = dma.vmem_to_hbm [thread:$0]  %s1050, 256, %s1047, %s1015
        $region44: #{tpu_custom_call.1} parent=27 // pred_fallthru
          _
      $region28: #{tpu_custom_call.1} parent=5 // pred_fallthru
        _
      %p1053 = scmp.le.s32.totalorder 2, %s20
      // Predicated region
      $region45: #{tpu_custom_call.1} parent=5 // pred_check
        %p1054 = pneg %p1053
      $region46: #{tpu_custom_call.1} parent=5 // pred_check_branch
        %1056 = sbr.rel (%p1054) target = $region48
      $region47: #{tpu_custom_call.1} parent=5 // pred_region
        %s1057 = ssub.s32 %s20, 2
        // Predicated region
        $region49: #{tpu_custom_call.1} parent=47 // pred_check
          %p1058 = pneg %p117
        $region50: #{tpu_custom_call.1} parent=47 // pred_check_branch
          %1060 = sbr.rel (%p1058) target = $region52
        $region51: #{tpu_custom_call.1} parent=47 // pred_region
          %s1061 = sand.u32 %s102, 1
          %s1062 = scalar_lea.sflag [#allocation4], %s1061
          %s1063 = sand.u32 %s102, 1
          %s1064 = smul.addr %s1063, 96
          %s1065 = scalar_lea.vmem [#allocation7], %s1064
          %1066 = dma.done %s1062, 1536
        $region52: #{tpu_custom_call.1} parent=47 // pred_fallthru
          _
        // Predicated region
        $region53: #{tpu_custom_call.1} parent=47 // pred_check
          %p1067 = pneg %p145
        $region54: #{tpu_custom_call.1} parent=47 // pred_check_branch
          %1069 = sbr.rel (%p1067) target = $region56
        $region55: #{tpu_custom_call.1} parent=47 // pred_region
          %s1070 = sand.u32 %s130, 1
          %s1071 = scalar_lea.sflag [#allocation9], %s1070
          %s1072 = sand.u32 %s130, 1
          %s1073 = smul.addr %s1072, 16
          %s1074 = scalar_lea.vmem [#allocation8], %s1073
          %1075 = dma.done %s1071, 256
        $region56: #{tpu_custom_call.1} parent=47 // pred_fallthru
          _
      $region48: #{tpu_custom_call.1} parent=5 // pred_fallthru
        _
    $region6: #{tpu_custom_call.1} parent=1 // loop_footer
      %s24 = sadd.s32 1, %s20
    $region7: #{tpu_custom_call.1} parent=1 // loop_footer_branch
      %19 = sbr.rel target = $region3
    $region8: #{tpu_custom_call.1} parent=1 // loop_exit
      _
    %1076 = vsyncpa [#allocation3], 1
    %s1077 = scalar_lea.sflag [#allocation3], 1
    %1078 = vsyncpa %s1077, 1
    %1079 = vsyncpa [#allocation6], 1
    %1080 = vsyncpa [#allocation4], 1
    %s1081 = scalar_lea.sflag [#allocation4], 1
    %1082 = vsyncpa %s1081, 1
    %1083 = vsyncpa [#allocation9], 1
    %s1084 = scalar_lea.sflag [#allocation9], 1
    %1085 = vsyncpa %s1084, 1

</llo_original>
